<compile_context>
chip_gen: v7x
topology: tpu7x:2x2x1
jax: 0.10.0
libtpu: 0.0.40
codegen_flags: <defaults>
</compile_context>

<pallas_src>
import jax
import jax.numpy as jnp
from jax.experimental import pallas as pl
from jax.experimental.pallas import tpu as pltpu

# ---------------- config (small synthetic BERT) ----------------
VOCAB = 100
HIDDEN = 32
HEADS = 2
HEAD_DIM = HIDDEN // HEADS
LAYERS = 2
INTER = 64
MAX_POS = 32
TYPE_VOCAB = 2
NUM_LABELS = 2
LN_EPS = 1e-12


# ---------------- single fused forward kernel ----------------
def _fused_forward_kernel(
    emb_ref, bias_ref, eln_g_ref, eln_b_ref,
    wqkv_ref, bqkv_ref, wo_ref, bo_ref,
    ln1_g_ref, ln1_b_ref, w1_ref, b1_ref, w2_ref, b2_ref,
    ln2_g_ref, ln2_b_ref,
    pool_w_ref, pool_b_ref, out_w_ref, out_b_ref,
    logits_ref,
):
    def layernorm(x, g, b):
        mean = jnp.mean(x, axis=-1, keepdims=True)
        var = jnp.mean((x - mean) ** 2, axis=-1, keepdims=True)
        return (x - mean) * jax.lax.rsqrt(var + LN_EPS) * g + b

    def mm(x_f32, w_bf16, b_f32):
        # bf16 MXU operands, f32 accumulation, f32 bias add.
        return jnp.dot(x_f32.astype(jnp.bfloat16), w_bf16,
                       preferred_element_type=jnp.float32) + b_f32

    # ---- embeddings LayerNorm ----
    h = emb_ref[0].astype(jnp.float32)           # (S, H)
    h = layernorm(h, eln_g_ref[...], eln_b_ref[...])

    bias = bias_ref[0]                           # (1, S) additive key mask
    scale = float(HEAD_DIM) ** -0.5

    # ---- encoder stack (static unroll over layers & heads) ----
    for l in range(LAYERS):
        qkv = mm(h, wqkv_ref[l], bqkv_ref[l])    # (S, 3H)

        ctx_heads = []
        for hd in range(HEADS):
            q = qkv[:, hd * HEAD_DIM:(hd + 1) * HEAD_DIM]                      # (S, Dh)
            k = qkv[:, HIDDEN + hd * HEAD_DIM:HIDDEN + (hd + 1) * HEAD_DIM]
            v = qkv[:, 2 * HIDDEN + hd * HEAD_DIM:2 * HIDDEN + (hd + 1) * HEAD_DIM]

            scores = jax.lax.dot_general(
                q.astype(jnp.bfloat16), k.astype(jnp.bfloat16),
                (((1,), (1,)), ((), ())),
                preferred_element_type=jnp.float32) * scale + bias             # (S, S)

            m = jnp.max(scores, axis=-1, keepdims=True)
            p = jnp.exp(scores - m)
            p = p / jnp.sum(p, axis=-1, keepdims=True)

            ctx_heads.append(
                jnp.dot(p.astype(jnp.bfloat16), v.astype(jnp.bfloat16),
                        preferred_element_type=jnp.float32))                   # (S, Dh)

        ctx = jnp.concatenate(ctx_heads, axis=-1)                              # (S, H)

        attn_out = mm(ctx, wo_ref[l], bo_ref[l])
        h = layernorm(h + attn_out, ln1_g_ref[l], ln1_b_ref[l])

        ff = mm(h, w1_ref[l], b1_ref[l])                                       # (S, INTER)
        ff = jax.nn.gelu(ff, approximate=True)
        ff = mm(ff, w2_ref[l], b2_ref[l])                                      # (S, H)
        h = layernorm(h + ff, ln2_g_ref[l], ln2_b_ref[l])

    # ---- pooler: tanh(W @ h[0] + b) ----
    cls = h[0:1, :]                                                            # (1, H)
    pooled = jnp.tanh(mm(cls, pool_w_ref[...], pool_b_ref[...]))               # (1, H)

    # ---- dropout(p=0.3): identity at inference ----
    # ---- classifier head ----
    logits = mm(pooled, out_w_ref[...], out_b_ref[...])                        # (1, NUM_LABELS)
    logits_ref[0] = logits.astype(logits_ref.dtype)


# ---------------- parameter init (deterministic) ----------------
def init_params(key):
    counter = [0]
    keys = jax.random.split(key, 256)

    def nrm(shape, dtype=jnp.float32):
        k = keys[counter[0]]
        counter[0] += 1
        return (0.02 * jax.random.normal(k, shape)).astype(dtype)

    bf16 = jnp.bfloat16
    p = {
        "word_emb": nrm((VOCAB, HIDDEN)),
        "pos_emb": nrm((MAX_POS, HIDDEN)),
        "type_emb": nrm((TYPE_VOCAB, HIDDEN)),
        "emb_ln_g": jnp.ones((1, HIDDEN), jnp.float32),
        "emb_ln_b": jnp.zeros((1, HIDDEN), jnp.float32),
        # layer-stacked weights; matmul weights stored bf16 for MXU feeding.
        "wqkv": nrm((LAYERS, HIDDEN, 3 * HIDDEN), bf16),
        "bqkv": jnp.zeros((LAYERS, 1, 3 * HIDDEN), jnp.float32),
        "wo": nrm((LAYERS, HIDDEN, HIDDEN), bf16),
        "bo": jnp.zeros((LAYERS, 1, HIDDEN), jnp.float32),
        "ln1_g": jnp.ones((LAYERS, 1, HIDDEN), jnp.float32),
        "ln1_b": jnp.zeros((LAYERS, 1, HIDDEN), jnp.float32),
        "w1": nrm((LAYERS, HIDDEN, INTER), bf16),
        "b1": jnp.zeros((LAYERS, 1, INTER), jnp.float32),
        "w2": nrm((LAYERS, INTER, HIDDEN), bf16),
        "b2": jnp.zeros((LAYERS, 1, HIDDEN), jnp.float32),
        "ln2_g": jnp.ones((LAYERS, 1, HIDDEN), jnp.float32),
        "ln2_b": jnp.zeros((LAYERS, 1, HIDDEN), jnp.float32),
        "pool_w": nrm((HIDDEN, HIDDEN), bf16),
        "pool_b": jnp.zeros((1, HIDDEN), jnp.float32),
        "out_w": nrm((HIDDEN, NUM_LABELS), bf16),
        "out_b": jnp.zeros((1, NUM_LABELS), jnp.float32),
    }
    return p


# ---------------- model forward ----------------
def rank_model_forward(params, input_ids, attention_mask):
    B, S = input_ids.shape

    # --- embeddings (gather glue in JAX; LN + everything else in the kernel) ---
    token_type_ids = jnp.zeros_like(input_ids)
    emb = (params["word_emb"][input_ids]
           + params["pos_emb"][:S][None, :, :]
           + params["type_emb"][token_type_ids])                    # (B, S, H) f32

    # --- extended attention mask: (1 - m) * -10000, shared across heads ---
    attn_bias = ((1.0 - attention_mask.astype(jnp.float32)) * -10000.0)[:, None, :]  # (B,1,S)

    const2 = lambda b: (0, 0)
    const3 = lambda b: (0, 0, 0)

    out = pl.pallas_call(
        _fused_forward_kernel,
        out_shape=jax.ShapeDtypeStruct((B, 1, NUM_LABELS), jnp.float32),
        grid=(B,),
        in_specs=[
            pl.BlockSpec((1, S, HIDDEN), lambda b: (b, 0, 0)),                 # emb
            pl.BlockSpec((1, 1, S), lambda b: (b, 0, 0)),                      # attn bias
            pl.BlockSpec((1, HIDDEN), const2),                                 # emb_ln_g
            pl.BlockSpec((1, HIDDEN), const2),                                 # emb_ln_b
            pl.BlockSpec((LAYERS, HIDDEN, 3 * HIDDEN), const3),                # wqkv
            pl.BlockSpec((LAYERS, 1, 3 * HIDDEN), const3),                     # bqkv
            pl.BlockSpec((LAYERS, HIDDEN, HIDDEN), const3),                    # wo
            pl.BlockSpec((LAYERS, 1, HIDDEN), const3),                         # bo
            pl.BlockSpec((LAYERS, 1, HIDDEN), const3),                         # ln1_g
            pl.BlockSpec((LAYERS, 1, HIDDEN), const3),                         # ln1_b
            pl.BlockSpec((LAYERS, HIDDEN, INTER), const3),                     # w1
            pl.BlockSpec((LAYERS, 1, INTER), const3),                          # b1
            pl.BlockSpec((LAYERS, INTER, HIDDEN), const3),                     # w2
            pl.BlockSpec((LAYERS, 1, HIDDEN), const3),                         # b2
            pl.BlockSpec((LAYERS, 1, HIDDEN), const3),                         # ln2_g
            pl.BlockSpec((LAYERS, 1, HIDDEN), const3),                         # ln2_b
            pl.BlockSpec((HIDDEN, HIDDEN), const2),                            # pool_w
            pl.BlockSpec((1, HIDDEN), const2),                                 # pool_b
            pl.BlockSpec((HIDDEN, NUM_LABELS), const2),                        # out_w
            pl.BlockSpec((1, NUM_LABELS), const2),                             # out_b
        ],
        out_specs=pl.BlockSpec((1, 1, NUM_LABELS), lambda b: (b, 0, 0)),
        compiler_params=pltpu.CompilerParams(
            dimension_semantics=("parallel",)),                                # v7x: 2 TCs
    )(emb, attn_bias,
      params["emb_ln_g"], params["emb_ln_b"],
      params["wqkv"], params["bqkv"], params["wo"], params["bo"],
      params["ln1_g"], params["ln1_b"], params["w1"], params["b1"],
      params["w2"], params["b2"], params["ln2_g"], params["ln2_b"],
      params["pool_w"], params["pool_b"], params["out_w"], params["out_b"])

    return out.reshape(B, NUM_LABELS)


if __name__ == "__main__":
    B, S = 2, 8
    key = jax.random.PRNGKey(0)
    pkey, ikey = jax.random.split(key)

    params = init_params(pkey)
    input_ids = jax.random.randint(ikey, (B, S), 0, VOCAB, dtype=jnp.int32)
    attention_mask = jnp.array(
        [[1, 1, 1, 1, 1, 1, 0, 0],
         [1, 1, 1, 1, 0, 0, 0, 0]], dtype=jnp.int32)

    logits = jax.jit(rank_model_forward)(params, input_ids, attention_mask)
    logits = jax.block_until_ready(logits)
    assert logits.shape == (B, NUM_LABELS)
    assert bool(jnp.all(jnp.isfinite(logits)))
    print("KERNEL_OK")
</pallas_src>

<mosaic_0001>
module attributes {stable_mosaic.version = 11 : i64} {
  func.func @_fused_forward_kernel(%arg0: i32, %arg1: memref<1x8x32xf32, #tpu.memory_space<vmem>>, %arg2: memref<1x1x8xf32, #tpu.memory_space<vmem>>, %arg3: memref<1x32xf32, #tpu.memory_space<vmem>>, %arg4: memref<1x32xf32, #tpu.memory_space<vmem>>, %arg5: memref<2x32x96xbf16, #tpu.memory_space<vmem>>, %arg6: memref<2x1x96xf32, #tpu.memory_space<vmem>>, %arg7: memref<2x32x32xbf16, #tpu.memory_space<vmem>>, %arg8: memref<2x1x32xf32, #tpu.memory_space<vmem>>, %arg9: memref<2x1x32xf32, #tpu.memory_space<vmem>>, %arg10: memref<2x1x32xf32, #tpu.memory_space<vmem>>, %arg11: memref<2x32x64xbf16, #tpu.memory_space<vmem>>, %arg12: memref<2x1x64xf32, #tpu.memory_space<vmem>>, %arg13: memref<2x64x32xbf16, #tpu.memory_space<vmem>>, %arg14: memref<2x1x32xf32, #tpu.memory_space<vmem>>, %arg15: memref<2x1x32xf32, #tpu.memory_space<vmem>>, %arg16: memref<2x1x32xf32, #tpu.memory_space<vmem>>, %arg17: memref<32x32xbf16, #tpu.memory_space<vmem>>, %arg18: memref<1x32xf32, #tpu.memory_space<vmem>>, %arg19: memref<32x2xbf16, #tpu.memory_space<vmem>>, %arg20: memref<1x2xf32, #tpu.memory_space<vmem>>, %arg21: memref<1x1x2xf32, #tpu.memory_space<vmem>>) attributes {dimension_semantics = [#tpu.dimension_semantics<parallel>], iteration_bounds = array<i64: 2>, scalar_prefetch = 0 : i64, scratch_operands = 0 : i64, tpu.core_type = #tpu.core_type<tc>, window_params = [{transform_indices = @transform_0, window_bounds = array<i64: 1, 8, 32>}, {transform_indices = @transform_1, window_bounds = array<i64: 1, 1, 8>}, {pipeline_mode = #tpu.pipeline_mode<synchronous>, transform_indices = @transform_2, window_bounds = array<i64: 1, 32>}, {pipeline_mode = #tpu.pipeline_mode<synchronous>, transform_indices = @transform_3, window_bounds = array<i64: 1, 32>}, {pipeline_mode = #tpu.pipeline_mode<synchronous>, transform_indices = @transform_4, window_bounds = array<i64: 2, 32, 96>}, {pipeline_mode = #tpu.pipeline_mode<synchronous>, transform_indices = @transform_5, window_bounds = array<i64: 2, 1, 96>}, {pipeline_mode = #tpu.pipeline_mode<synchronous>, transform_indices = @transform_6, window_bounds = array<i64: 2, 32, 32>}, {pipeline_mode = #tpu.pipeline_mode<synchronous>, transform_indices = @transform_7, window_bounds = array<i64: 2, 1, 32>}, {pipeline_mode = #tpu.pipeline_mode<synchronous>, transform_indices = @transform_8, window_bounds = array<i64: 2, 1, 32>}, {pipeline_mode = #tpu.pipeline_mode<synchronous>, transform_indices = @transform_9, window_bounds = array<i64: 2, 1, 32>}, {pipeline_mode = #tpu.pipeline_mode<synchronous>, transform_indices = @transform_10, window_bounds = array<i64: 2, 32, 64>}, {pipeline_mode = #tpu.pipeline_mode<synchronous>, transform_indices = @transform_11, window_bounds = array<i64: 2, 1, 64>}, {pipeline_mode = #tpu.pipeline_mode<synchronous>, transform_indices = @transform_12, window_bounds = array<i64: 2, 64, 32>}, {pipeline_mode = #tpu.pipeline_mode<synchronous>, transform_indices = @transform_13, window_bounds = array<i64: 2, 1, 32>}, {pipeline_mode = #tpu.pipeline_mode<synchronous>, transform_indices = @transform_14, window_bounds = array<i64: 2, 1, 32>}, {pipeline_mode = #tpu.pipeline_mode<synchronous>, transform_indices = @transform_15, window_bounds = array<i64: 2, 1, 32>}, {pipeline_mode = #tpu.pipeline_mode<synchronous>, transform_indices = @transform_16, window_bounds = array<i64: 32, 32>}, {pipeline_mode = #tpu.pipeline_mode<synchronous>, transform_indices = @transform_17, window_bounds = array<i64: 1, 32>}, {pipeline_mode = #tpu.pipeline_mode<synchronous>, transform_indices = @transform_18, window_bounds = array<i64: 32, 2>}, {pipeline_mode = #tpu.pipeline_mode<synchronous>, transform_indices = @transform_19, window_bounds = array<i64: 1, 2>}, {transform_indices = @transform_20, window_bounds = array<i64: 1, 1, 2>}]} {
    %c0 = arith.constant 0 : index
    %c0_0 = arith.constant 0 : index
    %c0_1 = arith.constant 0 : index
    %0 = vector.load %arg1[%c0, %c0_0, %c0_1] : memref<1x8x32xf32, #tpu.memory_space<vmem>>, vector<1x8x32xf32>
    %1 = vector.shape_cast %0 : vector<1x8x32xf32> to vector<8x32xf32>
    %c0_2 = arith.constant 0 : index
    %c0_3 = arith.constant 0 : index
    %2 = vector.load %arg3[%c0_2, %c0_3] : memref<1x32xf32, #tpu.memory_space<vmem>>, vector<1x32xf32>
    %c0_4 = arith.constant 0 : index
    %c0_5 = arith.constant 0 : index
    %3 = vector.load %arg4[%c0_4, %c0_5] : memref<1x32xf32, #tpu.memory_space<vmem>>, vector<1x32xf32>
    %cst = arith.constant dense<0.000000e+00> : vector<8xf32>
    %4 = vector.multi_reduction <add>, %1, %cst [1] : vector<8x32xf32> to vector<8xf32>
    %5 = vector.shape_cast %4 : vector<8xf32> to vector<8x1xf32>
    %cst_6 = arith.constant 3.200000e+01 : f32
    %6 = vector.broadcast %cst_6 : f32 to vector<8x1xf32>
    %7 = arith.divf %5, %6 : vector<8x1xf32>
    %8 = vector.broadcast %7 : vector<8x1xf32> to vector<8x32xf32>
    %9 = arith.subf %1, %8 : vector<8x32xf32>
    %10 = arith.mulf %9, %9 : vector<8x32xf32>
    %cst_7 = arith.constant dense<0.000000e+00> : vector<8xf32>
    %11 = vector.multi_reduction <add>, %10, %cst_7 [1] : vector<8x32xf32> to vector<8xf32>
    %12 = vector.shape_cast %11 : vector<8xf32> to vector<8x1xf32>
    %cst_8 = arith.constant 3.200000e+01 : f32
    %13 = vector.broadcast %cst_8 : f32 to vector<8x1xf32>
    %14 = arith.divf %12, %13 : vector<8x1xf32>
    %15 = vector.broadcast %7 : vector<8x1xf32> to vector<8x32xf32>
    %16 = arith.subf %1, %15 : vector<8x32xf32>
    %cst_9 = arith.constant 9.99999996E-13 : f32
    %17 = vector.broadcast %cst_9 : f32 to vector<8x1xf32>
    %18 = arith.addf %14, %17 : vector<8x1xf32>
    %19 = math.rsqrt %18 : vector<8x1xf32>
    %20 = vector.broadcast %19 : vector<8x1xf32> to vector<8x32xf32>
    %21 = arith.mulf %16, %20 : vector<8x32xf32>
    %22 = vector.broadcast %2 : vector<1x32xf32> to vector<8x32xf32>
    %23 = arith.mulf %21, %22 : vector<8x32xf32>
    %24 = vector.broadcast %3 : vector<1x32xf32> to vector<8x32xf32>
    %25 = arith.addf %23, %24 : vector<8x32xf32>
    %c0_10 = arith.constant 0 : index
    %c0_11 = arith.constant 0 : index
    %c0_12 = arith.constant 0 : index
    %26 = vector.load %arg2[%c0_10, %c0_11, %c0_12] : memref<1x1x8xf32, #tpu.memory_space<vmem>>, vector<1x1x8xf32>
    %27 = vector.shape_cast %26 : vector<1x1x8xf32> to vector<1x8xf32>
    %c0_13 = arith.constant 0 : index
    %c0_14 = arith.constant 0 : index
    %c0_15 = arith.constant 0 : index
    %28 = vector.load %arg5[%c0_13, %c0_14, %c0_15] : memref<2x32x96xbf16, #tpu.memory_space<vmem>>, vector<1x32x96xbf16>
    %29 = vector.shape_cast %28 : vector<1x32x96xbf16> to vector<32x96xbf16>
    %c0_16 = arith.constant 0 : index
    %c0_17 = arith.constant 0 : index
    %c0_18 = arith.constant 0 : index
    %30 = vector.load %arg6[%c0_16, %c0_17, %c0_18] : memref<2x1x96xf32, #tpu.memory_space<vmem>>, vector<1x1x96xf32>
    %31 = vector.shape_cast %30 : vector<1x1x96xf32> to vector<1x96xf32>
    %32 = arith.truncf %25 : vector<8x32xf32> to vector<8x32xbf16>
    %cst_19 = arith.constant dense<0.000000e+00> : vector<8x96xf32>
    %33 = tpu.matmul %32, %29, %cst_19 {dimension_numbers = #tpu.dot_dimension_numbers<[1], [0], [0], [1], [0, 0, 1, 1], [], []>} : vector<8x32xbf16>, vector<32x96xbf16>, vector<8x96xf32> -> vector<8x96xf32>
    %34 = vector.broadcast %31 : vector<1x96xf32> to vector<8x96xf32>
    %35 = arith.addf %33, %34 : vector<8x96xf32>
    %36 = vector.extract_strided_slice %35 {offsets = [0, 0], sizes = [8, 16], strides = [1, 1]} : vector<8x96xf32> to vector<8x16xf32>
    %37 = vector.extract_strided_slice %35 {offsets = [0, 32], sizes = [8, 16], strides = [1, 1]} : vector<8x96xf32> to vector<8x16xf32>
    %38 = vector.extract_strided_slice %35 {offsets = [0, 64], sizes = [8, 16], strides = [1, 1]} : vector<8x96xf32> to vector<8x16xf32>
    %39 = arith.truncf %36 : vector<8x16xf32> to vector<8x16xbf16>
    %40 = arith.truncf %37 : vector<8x16xf32> to vector<8x16xbf16>
    %cst_20 = arith.constant dense<0.000000e+00> : vector<8x8xf32>
    %41 = tpu.matmul %39, %40, %cst_20 {dimension_numbers = #tpu.dot_dimension_numbers<[1], [1], [0], [0], [0, 0, 1, 0], [], []>} : vector<8x16xbf16>, vector<8x16xbf16>, vector<8x8xf32> -> vector<8x8xf32>
    %cst_21 = arith.constant 2.500000e-01 : f32
    %42 = vector.broadcast %cst_21 : f32 to vector<8x8xf32>
    %43 = arith.mulf %41, %42 : vector<8x8xf32>
    %44 = vector.broadcast %27 : vector<1x8xf32> to vector<8x8xf32>
    %45 = arith.addf %43, %44 : vector<8x8xf32>
    %cst_22 = arith.constant dense<0xFF800000> : vector<8xf32>
    %46 = vector.multi_reduction <maximumf>, %45, %cst_22 [1] : vector<8x8xf32> to vector<8xf32>
    %47 = vector.shape_cast %46 : vector<8xf32> to vector<8x1xf32>
    %48 = vector.broadcast %47 : vector<8x1xf32> to vector<8x8xf32>
    %49 = arith.subf %45, %48 : vector<8x8xf32>
    %50 = math.exp %49 : vector<8x8xf32>
    %cst_23 = arith.constant dense<0.000000e+00> : vector<8xf32>
    %51 = vector.multi_reduction <add>, %50, %cst_23 [1] : vector<8x8xf32> to vector<8xf32>
    %52 = vector.shape_cast %51 : vector<8xf32> to vector<8x1xf32>
    %53 = vector.broadcast %52 : vector<8x1xf32> to vector<8x8xf32>
    %54 = arith.divf %50, %53 : vector<8x8xf32>
    %55 = arith.truncf %54 : vector<8x8xf32> to vector<8x8xbf16>
    %56 = arith.truncf %38 : vector<8x16xf32> to vector<8x16xbf16>
    %cst_24 = arith.constant dense<0.000000e+00> : vector<8x16xf32>
    %57 = tpu.matmul %55, %56, %cst_24 {dimension_numbers = #tpu.dot_dimension_numbers<[1], [0], [0], [1], [0, 0, 1, 1], [], []>} : vector<8x8xbf16>, vector<8x16xbf16>, vector<8x16xf32> -> vector<8x16xf32>
    %58 = vector.extract_strided_slice %35 {offsets = [0, 16], sizes = [8, 16], strides = [1, 1]} : vector<8x96xf32> to vector<8x16xf32>
    %59 = vector.extract_strided_slice %35 {offsets = [0, 48], sizes = [8, 16], strides = [1, 1]} : vector<8x96xf32> to vector<8x16xf32>
    %60 = vector.extract_strided_slice %35 {offsets = [0, 80], sizes = [8, 16], strides = [1, 1]} : vector<8x96xf32> to vector<8x16xf32>
    %61 = arith.truncf %58 : vector<8x16xf32> to vector<8x16xbf16>
    %62 = arith.truncf %59 : vector<8x16xf32> to vector<8x16xbf16>
    %cst_25 = arith.constant dense<0.000000e+00> : vector<8x8xf32>
    %63 = tpu.matmul %61, %62, %cst_25 {dimension_numbers = #tpu.dot_dimension_numbers<[1], [1], [0], [0], [0, 0, 1, 0], [], []>} : vector<8x16xbf16>, vector<8x16xbf16>, vector<8x8xf32> -> vector<8x8xf32>
    %cst_26 = arith.constant 2.500000e-01 : f32
    %64 = vector.broadcast %cst_26 : f32 to vector<8x8xf32>
    %65 = arith.mulf %63, %64 : vector<8x8xf32>
    %66 = vector.broadcast %27 : vector<1x8xf32> to vector<8x8xf32>
    %67 = arith.addf %65, %66 : vector<8x8xf32>
    %cst_27 = arith.constant dense<0xFF800000> : vector<8xf32>
    %68 = vector.multi_reduction <maximumf>, %67, %cst_27 [1] : vector<8x8xf32> to vector<8xf32>
    %69 = vector.shape_cast %68 : vector<8xf32> to vector<8x1xf32>
    %70 = vector.broadcast %69 : vector<8x1xf32> to vector<8x8xf32>
    %71 = arith.subf %67, %70 : vector<8x8xf32>
    %72 = math.exp %71 : vector<8x8xf32>
    %cst_28 = arith.constant dense<0.000000e+00> : vector<8xf32>
    %73 = vector.multi_reduction <add>, %72, %cst_28 [1] : vector<8x8xf32> to vector<8xf32>
    %74 = vector.shape_cast %73 : vector<8xf32> to vector<8x1xf32>
    %75 = vector.broadcast %74 : vector<8x1xf32> to vector<8x8xf32>
    %76 = arith.divf %72, %75 : vector<8x8xf32>
    %77 = arith.truncf %76 : vector<8x8xf32> to vector<8x8xbf16>
    %78 = arith.truncf %60 : vector<8x16xf32> to vector<8x16xbf16>
    %cst_29 = arith.constant dense<0.000000e+00> : vector<8x16xf32>
    %79 = tpu.matmul %77, %78, %cst_29 {dimension_numbers = #tpu.dot_dimension_numbers<[1], [0], [0], [1], [0, 0, 1, 1], [], []>} : vector<8x8xbf16>, vector<8x16xbf16>, vector<8x16xf32> -> vector<8x16xf32>
    %80 = tpu.concatenate %57, %79 in 1 : vector<8x16xf32>, vector<8x16xf32> -> vector<8x32xf32>
    %c0_30 = arith.constant 0 : index
    %c0_31 = arith.constant 0 : index
    %c0_32 = arith.constant 0 : index
    %81 = vector.load %arg7[%c0_30, %c0_31, %c0_32] : memref<2x32x32xbf16, #tpu.memory_space<vmem>>, vector<1x32x32xbf16>
    %82 = vector.shape_cast %81 : vector<1x32x32xbf16> to vector<32x32xbf16>
    %c0_33 = arith.constant 0 : index
    %c0_34 = arith.constant 0 : index
    %c0_35 = arith.constant 0 : index
    %83 = vector.load %arg8[%c0_33, %c0_34, %c0_35] : memref<2x1x32xf32, #tpu.memory_space<vmem>>, vector<1x1x32xf32>
    %84 = vector.shape_cast %83 : vector<1x1x32xf32> to vector<1x32xf32>
    %85 = arith.truncf %80 : vector<8x32xf32> to vector<8x32xbf16>
    %cst_36 = arith.constant dense<0.000000e+00> : vector<8x32xf32>
    %86 = tpu.matmul %85, %82, %cst_36 {dimension_numbers = #tpu.dot_dimension_numbers<[1], [0], [0], [1], [0, 0, 1, 1], [], []>} : vector<8x32xbf16>, vector<32x32xbf16>, vector<8x32xf32> -> vector<8x32xf32>
    %87 = vector.broadcast %84 : vector<1x32xf32> to vector<8x32xf32>
    %88 = arith.addf %86, %87 : vector<8x32xf32>
    %89 = arith.addf %25, %88 : vector<8x32xf32>
    %c0_37 = arith.constant 0 : index
    %c0_38 = arith.constant 0 : index
    %c0_39 = arith.constant 0 : index
    %90 = vector.load %arg9[%c0_37, %c0_38, %c0_39] : memref<2x1x32xf32, #tpu.memory_space<vmem>>, vector<1x1x32xf32>
    %91 = vector.shape_cast %90 : vector<1x1x32xf32> to vector<1x32xf32>
    %c0_40 = arith.constant 0 : index
    %c0_41 = arith.constant 0 : index
    %c0_42 = arith.constant 0 : index
    %92 = vector.load %arg10[%c0_40, %c0_41, %c0_42] : memref<2x1x32xf32, #tpu.memory_space<vmem>>, vector<1x1x32xf32>
    %93 = vector.shape_cast %92 : vector<1x1x32xf32> to vector<1x32xf32>
    %cst_43 = arith.constant dense<0.000000e+00> : vector<8xf32>
    %94 = vector.multi_reduction <add>, %89, %cst_43 [1] : vector<8x32xf32> to vector<8xf32>
    %95 = vector.shape_cast %94 : vector<8xf32> to vector<8x1xf32>
    %cst_44 = arith.constant 3.200000e+01 : f32
    %96 = vector.broadcast %cst_44 : f32 to vector<8x1xf32>
    %97 = arith.divf %95, %96 : vector<8x1xf32>
    %98 = vector.broadcast %97 : vector<8x1xf32> to vector<8x32xf32>
    %99 = arith.subf %89, %98 : vector<8x32xf32>
    %100 = arith.mulf %99, %99 : vector<8x32xf32>
    %cst_45 = arith.constant dense<0.000000e+00> : vector<8xf32>
    %101 = vector.multi_reduction <add>, %100, %cst_45 [1] : vector<8x32xf32> to vector<8xf32>
    %102 = vector.shape_cast %101 : vector<8xf32> to vector<8x1xf32>
    %cst_46 = arith.constant 3.200000e+01 : f32
    %103 = vector.broadcast %cst_46 : f32 to vector<8x1xf32>
    %104 = arith.divf %102, %103 : vector<8x1xf32>
    %105 = vector.broadcast %97 : vector<8x1xf32> to vector<8x32xf32>
    %106 = arith.subf %89, %105 : vector<8x32xf32>
    %cst_47 = arith.constant 9.99999996E-13 : f32
    %107 = vector.broadcast %cst_47 : f32 to vector<8x1xf32>
    %108 = arith.addf %104, %107 : vector<8x1xf32>
    %109 = math.rsqrt %108 : vector<8x1xf32>
    %110 = vector.broadcast %109 : vector<8x1xf32> to vector<8x32xf32>
    %111 = arith.mulf %106, %110 : vector<8x32xf32>
    %112 = vector.broadcast %91 : vector<1x32xf32> to vector<8x32xf32>
    %113 = arith.mulf %111, %112 : vector<8x32xf32>
    %114 = vector.broadcast %93 : vector<1x32xf32> to vector<8x32xf32>
    %115 = arith.addf %113, %114 : vector<8x32xf32>
    %c0_48 = arith.constant 0 : index
    %c0_49 = arith.constant 0 : index
    %c0_50 = arith.constant 0 : index
    %116 = vector.load %arg11[%c0_48, %c0_49, %c0_50] : memref<2x32x64xbf16, #tpu.memory_space<vmem>>, vector<1x32x64xbf16>
    %117 = vector.shape_cast %116 : vector<1x32x64xbf16> to vector<32x64xbf16>
    %c0_51 = arith.constant 0 : index
    %c0_52 = arith.constant 0 : index
    %c0_53 = arith.constant 0 : index
    %118 = vector.load %arg12[%c0_51, %c0_52, %c0_53] : memref<2x1x64xf32, #tpu.memory_space<vmem>>, vector<1x1x64xf32>
    %119 = vector.shape_cast %118 : vector<1x1x64xf32> to vector<1x64xf32>
    %120 = arith.truncf %115 : vector<8x32xf32> to vector<8x32xbf16>
    %cst_54 = arith.constant dense<0.000000e+00> : vector<8x64xf32>
    %121 = tpu.matmul %120, %117, %cst_54 {dimension_numbers = #tpu.dot_dimension_numbers<[1], [0], [0], [1], [0, 0, 1, 1], [], []>} : vector<8x32xbf16>, vector<32x64xbf16>, vector<8x64xf32> -> vector<8x64xf32>
    %122 = vector.broadcast %119 : vector<1x64xf32> to vector<8x64xf32>
    %123 = arith.addf %121, %122 : vector<8x64xf32>
    %124 = arith.mulf %123, %123 : vector<8x64xf32>
    %125 = arith.mulf %123, %124 : vector<8x64xf32>
    %cst_55 = arith.constant 4.471500e-02 : f32
    %126 = vector.broadcast %cst_55 : f32 to vector<8x64xf32>
    %127 = arith.mulf %126, %125 : vector<8x64xf32>
    %128 = arith.addf %123, %127 : vector<8x64xf32>
    %cst_56 = arith.constant 0.797884583 : f32
    %129 = vector.broadcast %cst_56 : f32 to vector<8x64xf32>
    %130 = arith.mulf %129, %128 : vector<8x64xf32>
    %131 = math.tanh %130 : vector<8x64xf32>
    %cst_57 = arith.constant 1.000000e+00 : f32
    %132 = vector.broadcast %cst_57 : f32 to vector<8x64xf32>
    %133 = arith.addf %132, %131 : vector<8x64xf32>
    %cst_58 = arith.constant 5.000000e-01 : f32
    %134 = vector.broadcast %cst_58 : f32 to vector<8x64xf32>
    %135 = arith.mulf %134, %133 : vector<8x64xf32>
    %136 = arith.mulf %123, %135 : vector<8x64xf32>
    %c0_59 = arith.constant 0 : index
    %c0_60 = arith.constant 0 : index
    %c0_61 = arith.constant 0 : index
    %137 = vector.load %arg13[%c0_59, %c0_60, %c0_61] : memref<2x64x32xbf16, #tpu.memory_space<vmem>>, vector<1x64x32xbf16>
    %138 = vector.shape_cast %137 : vector<1x64x32xbf16> to vector<64x32xbf16>
    %c0_62 = arith.constant 0 : index
    %c0_63 = arith.constant 0 : index
    %c0_64 = arith.constant 0 : index
    %139 = vector.load %arg14[%c0_62, %c0_63, %c0_64] : memref<2x1x32xf32, #tpu.memory_space<vmem>>, vector<1x1x32xf32>
    %140 = vector.shape_cast %139 : vector<1x1x32xf32> to vector<1x32xf32>
    %141 = arith.truncf %136 : vector<8x64xf32> to vector<8x64xbf16>
    %cst_65 = arith.constant dense<0.000000e+00> : vector<8x32xf32>
    %142 = tpu.matmul %141, %138, %cst_65 {dimension_numbers = #tpu.dot_dimension_numbers<[1], [0], [0], [1], [0, 0, 1, 1], [], []>} : vector<8x64xbf16>, vector<64x32xbf16>, vector<8x32xf32> -> vector<8x32xf32>
    %143 = vector.broadcast %140 : vector<1x32xf32> to vector<8x32xf32>
    %144 = arith.addf %142, %143 : vector<8x32xf32>
    %145 = arith.addf %115, %144 : vector<8x32xf32>
    %c0_66 = arith.constant 0 : index
    %c0_67 = arith.constant 0 : index
    %c0_68 = arith.constant 0 : index
    %146 = vector.load %arg15[%c0_66, %c0_67, %c0_68] : memref<2x1x32xf32, #tpu.memory_space<vmem>>, vector<1x1x32xf32>
    %147 = vector.shape_cast %146 : vector<1x1x32xf32> to vector<1x32xf32>
    %c0_69 = arith.constant 0 : index
    %c0_70 = arith.constant 0 : index
    %c0_71 = arith.constant 0 : index
    %148 = vector.load %arg16[%c0_69, %c0_70, %c0_71] : memref<2x1x32xf32, #tpu.memory_space<vmem>>, vector<1x1x32xf32>
    %149 = vector.shape_cast %148 : vector<1x1x32xf32> to vector<1x32xf32>
    %cst_72 = arith.constant dense<0.000000e+00> : vector<8xf32>
    %150 = vector.multi_reduction <add>, %145, %cst_72 [1] : vector<8x32xf32> to vector<8xf32>
    %151 = vector.shape_cast %150 : vector<8xf32> to vector<8x1xf32>
    %cst_73 = arith.constant 3.200000e+01 : f32
    %152 = vector.broadcast %cst_73 : f32 to vector<8x1xf32>
    %153 = arith.divf %151, %152 : vector<8x1xf32>
    %154 = vector.broadcast %153 : vector<8x1xf32> to vector<8x32xf32>
    %155 = arith.subf %145, %154 : vector<8x32xf32>
    %156 = arith.mulf %155, %155 : vector<8x32xf32>
    %cst_74 = arith.constant dense<0.000000e+00> : vector<8xf32>
    %157 = vector.multi_reduction <add>, %156, %cst_74 [1] : vector<8x32xf32> to vector<8xf32>
    %158 = vector.shape_cast %157 : vector<8xf32> to vector<8x1xf32>
    %cst_75 = arith.constant 3.200000e+01 : f32
    %159 = vector.broadcast %cst_75 : f32 to vector<8x1xf32>
    %160 = arith.divf %158, %159 : vector<8x1xf32>
    %161 = vector.broadcast %153 : vector<8x1xf32> to vector<8x32xf32>
    %162 = arith.subf %145, %161 : vector<8x32xf32>
    %cst_76 = arith.constant 9.99999996E-13 : f32
    %163 = vector.broadcast %cst_76 : f32 to vector<8x1xf32>
    %164 = arith.addf %160, %163 : vector<8x1xf32>
    %165 = math.rsqrt %164 : vector<8x1xf32>
    %166 = vector.broadcast %165 : vector<8x1xf32> to vector<8x32xf32>
    %167 = arith.mulf %162, %166 : vector<8x32xf32>
    %168 = vector.broadcast %147 : vector<1x32xf32> to vector<8x32xf32>
    %169 = arith.mulf %167, %168 : vector<8x32xf32>
    %170 = vector.broadcast %149 : vector<1x32xf32> to vector<8x32xf32>
    %171 = arith.addf %169, %170 : vector<8x32xf32>
    %c1 = arith.constant 1 : index
    %c0_77 = arith.constant 0 : index
    %c0_78 = arith.constant 0 : index
    %172 = vector.load %arg5[%c1, %c0_77, %c0_78] : memref<2x32x96xbf16, #tpu.memory_space<vmem>>, vector<1x32x96xbf16>
    %173 = vector.shape_cast %172 : vector<1x32x96xbf16> to vector<32x96xbf16>
    %c1_79 = arith.constant 1 : index
    %c0_80 = arith.constant 0 : index
    %c0_81 = arith.constant 0 : index
    %174 = vector.load %arg6[%c1_79, %c0_80, %c0_81] : memref<2x1x96xf32, #tpu.memory_space<vmem>>, vector<1x1x96xf32>
    %175 = vector.shape_cast %174 : vector<1x1x96xf32> to vector<1x96xf32>
    %176 = arith.truncf %171 : vector<8x32xf32> to vector<8x32xbf16>
    %cst_82 = arith.constant dense<0.000000e+00> : vector<8x96xf32>
    %177 = tpu.matmul %176, %173, %cst_82 {dimension_numbers = #tpu.dot_dimension_numbers<[1], [0], [0], [1], [0, 0, 1, 1], [], []>} : vector<8x32xbf16>, vector<32x96xbf16>, vector<8x96xf32> -> vector<8x96xf32>
    %178 = vector.broadcast %175 : vector<1x96xf32> to vector<8x96xf32>
    %179 = arith.addf %177, %178 : vector<8x96xf32>
    %180 = vector.extract_strided_slice %179 {offsets = [0, 0], sizes = [8, 16], strides = [1, 1]} : vector<8x96xf32> to vector<8x16xf32>
    %181 = vector.extract_strided_slice %179 {offsets = [0, 32], sizes = [8, 16], strides = [1, 1]} : vector<8x96xf32> to vector<8x16xf32>
    %182 = vector.extract_strided_slice %179 {offsets = [0, 64], sizes = [8, 16], strides = [1, 1]} : vector<8x96xf32> to vector<8x16xf32>
    %183 = arith.truncf %180 : vector<8x16xf32> to vector<8x16xbf16>
    %184 = arith.truncf %181 : vector<8x16xf32> to vector<8x16xbf16>
    %cst_83 = arith.constant dense<0.000000e+00> : vector<8x8xf32>
    %185 = tpu.matmul %183, %184, %cst_83 {dimension_numbers = #tpu.dot_dimension_numbers<[1], [1], [0], [0], [0, 0, 1, 0], [], []>} : vector<8x16xbf16>, vector<8x16xbf16>, vector<8x8xf32> -> vector<8x8xf32>
    %cst_84 = arith.constant 2.500000e-01 : f32
    %186 = vector.broadcast %cst_84 : f32 to vector<8x8xf32>
    %187 = arith.mulf %185, %186 : vector<8x8xf32>
    %188 = vector.broadcast %27 : vector<1x8xf32> to vector<8x8xf32>
    %189 = arith.addf %187, %188 : vector<8x8xf32>
    %cst_85 = arith.constant dense<0xFF800000> : vector<8xf32>
    %190 = vector.multi_reduction <maximumf>, %189, %cst_85 [1] : vector<8x8xf32> to vector<8xf32>
    %191 = vector.shape_cast %190 : vector<8xf32> to vector<8x1xf32>
    %192 = vector.broadcast %191 : vector<8x1xf32> to vector<8x8xf32>
    %193 = arith.subf %189, %192 : vector<8x8xf32>
    %194 = math.exp %193 : vector<8x8xf32>
    %cst_86 = arith.constant dense<0.000000e+00> : vector<8xf32>
    %195 = vector.multi_reduction <add>, %194, %cst_86 [1] : vector<8x8xf32> to vector<8xf32>
    %196 = vector.shape_cast %195 : vector<8xf32> to vector<8x1xf32>
    %197 = vector.broadcast %196 : vector<8x1xf32> to vector<8x8xf32>
    %198 = arith.divf %194, %197 : vector<8x8xf32>
    %199 = arith.truncf %198 : vector<8x8xf32> to vector<8x8xbf16>
    %200 = arith.truncf %182 : vector<8x16xf32> to vector<8x16xbf16>
    %cst_87 = arith.constant dense<0.000000e+00> : vector<8x16xf32>
    %201 = tpu.matmul %199, %200, %cst_87 {dimension_numbers = #tpu.dot_dimension_numbers<[1], [0], [0], [1], [0, 0, 1, 1], [], []>} : vector<8x8xbf16>, vector<8x16xbf16>, vector<8x16xf32> -> vector<8x16xf32>
    %202 = vector.extract_strided_slice %179 {offsets = [0, 16], sizes = [8, 16], strides = [1, 1]} : vector<8x96xf32> to vector<8x16xf32>
    %203 = vector.extract_strided_slice %179 {offsets = [0, 48], sizes = [8, 16], strides = [1, 1]} : vector<8x96xf32> to vector<8x16xf32>
    %204 = vector.extract_strided_slice %179 {offsets = [0, 80], sizes = [8, 16], strides = [1, 1]} : vector<8x96xf32> to vector<8x16xf32>
    %205 = arith.truncf %202 : vector<8x16xf32> to vector<8x16xbf16>
    %206 = arith.truncf %203 : vector<8x16xf32> to vector<8x16xbf16>
    %cst_88 = arith.constant dense<0.000000e+00> : vector<8x8xf32>
    %207 = tpu.matmul %205, %206, %cst_88 {dimension_numbers = #tpu.dot_dimension_numbers<[1], [1], [0], [0], [0, 0, 1, 0], [], []>} : vector<8x16xbf16>, vector<8x16xbf16>, vector<8x8xf32> -> vector<8x8xf32>
    %cst_89 = arith.constant 2.500000e-01 : f32
    %208 = vector.broadcast %cst_89 : f32 to vector<8x8xf32>
    %209 = arith.mulf %207, %208 : vector<8x8xf32>
    %210 = vector.broadcast %27 : vector<1x8xf32> to vector<8x8xf32>
    %211 = arith.addf %209, %210 : vector<8x8xf32>
    %cst_90 = arith.constant dense<0xFF800000> : vector<8xf32>
    %212 = vector.multi_reduction <maximumf>, %211, %cst_90 [1] : vector<8x8xf32> to vector<8xf32>
    %213 = vector.shape_cast %212 : vector<8xf32> to vector<8x1xf32>
    %214 = vector.broadcast %213 : vector<8x1xf32> to vector<8x8xf32>
    %215 = arith.subf %211, %214 : vector<8x8xf32>
    %216 = math.exp %215 : vector<8x8xf32>
    %cst_91 = arith.constant dense<0.000000e+00> : vector<8xf32>
    %217 = vector.multi_reduction <add>, %216, %cst_91 [1] : vector<8x8xf32> to vector<8xf32>
    %218 = vector.shape_cast %217 : vector<8xf32> to vector<8x1xf32>
    %219 = vector.broadcast %218 : vector<8x1xf32> to vector<8x8xf32>
    %220 = arith.divf %216, %219 : vector<8x8xf32>
    %221 = arith.truncf %220 : vector<8x8xf32> to vector<8x8xbf16>
    %222 = arith.truncf %204 : vector<8x16xf32> to vector<8x16xbf16>
    %cst_92 = arith.constant dense<0.000000e+00> : vector<8x16xf32>
    %223 = tpu.matmul %221, %222, %cst_92 {dimension_numbers = #tpu.dot_dimension_numbers<[1], [0], [0], [1], [0, 0, 1, 1], [], []>} : vector<8x8xbf16>, vector<8x16xbf16>, vector<8x16xf32> -> vector<8x16xf32>
    %224 = tpu.concatenate %201, %223 in 1 : vector<8x16xf32>, vector<8x16xf32> -> vector<8x32xf32>
    %c1_93 = arith.constant 1 : index
    %c0_94 = arith.constant 0 : index
    %c0_95 = arith.constant 0 : index
    %225 = vector.load %arg7[%c1_93, %c0_94, %c0_95] : memref<2x32x32xbf16, #tpu.memory_space<vmem>>, vector<1x32x32xbf16>
    %226 = vector.shape_cast %225 : vector<1x32x32xbf16> to vector<32x32xbf16>
    %c1_96 = arith.constant 1 : index
    %c0_97 = arith.constant 0 : index
    %c0_98 = arith.constant 0 : index
    %227 = vector.load %arg8[%c1_96, %c0_97, %c0_98] : memref<2x1x32xf32, #tpu.memory_space<vmem>>, vector<1x1x32xf32>
    %228 = vector.shape_cast %227 : vector<1x1x32xf32> to vector<1x32xf32>
    %229 = arith.truncf %224 : vector<8x32xf32> to vector<8x32xbf16>
    %cst_99 = arith.constant dense<0.000000e+00> : vector<8x32xf32>
    %230 = tpu.matmul %229, %226, %cst_99 {dimension_numbers = #tpu.dot_dimension_numbers<[1], [0], [0], [1], [0, 0, 1, 1], [], []>} : vector<8x32xbf16>, vector<32x32xbf16>, vector<8x32xf32> -> vector<8x32xf32>
    %231 = vector.broadcast %228 : vector<1x32xf32> to vector<8x32xf32>
    %232 = arith.addf %230, %231 : vector<8x32xf32>
    %233 = arith.addf %171, %232 : vector<8x32xf32>
    %c1_100 = arith.constant 1 : index
    %c0_101 = arith.constant 0 : index
    %c0_102 = arith.constant 0 : index
    %234 = vector.load %arg9[%c1_100, %c0_101, %c0_102] : memref<2x1x32xf32, #tpu.memory_space<vmem>>, vector<1x1x32xf32>
    %235 = vector.shape_cast %234 : vector<1x1x32xf32> to vector<1x32xf32>
    %c1_103 = arith.constant 1 : index
    %c0_104 = arith.constant 0 : index
    %c0_105 = arith.constant 0 : index
    %236 = vector.load %arg10[%c1_103, %c0_104, %c0_105] : memref<2x1x32xf32, #tpu.memory_space<vmem>>, vector<1x1x32xf32>
    %237 = vector.shape_cast %236 : vector<1x1x32xf32> to vector<1x32xf32>
    %cst_106 = arith.constant dense<0.000000e+00> : vector<8xf32>
    %238 = vector.multi_reduction <add>, %233, %cst_106 [1] : vector<8x32xf32> to vector<8xf32>
    %239 = vector.shape_cast %238 : vector<8xf32> to vector<8x1xf32>
    %cst_107 = arith.constant 3.200000e+01 : f32
    %240 = vector.broadcast %cst_107 : f32 to vector<8x1xf32>
    %241 = arith.divf %239, %240 : vector<8x1xf32>
    %242 = vector.broadcast %241 : vector<8x1xf32> to vector<8x32xf32>
    %243 = arith.subf %233, %242 : vector<8x32xf32>
    %244 = arith.mulf %243, %243 : vector<8x32xf32>
    %cst_108 = arith.constant dense<0.000000e+00> : vector<8xf32>
    %245 = vector.multi_reduction <add>, %244, %cst_108 [1] : vector<8x32xf32> to vector<8xf32>
    %246 = vector.shape_cast %245 : vector<8xf32> to vector<8x1xf32>
    %cst_109 = arith.constant 3.200000e+01 : f32
    %247 = vector.broadcast %cst_109 : f32 to vector<8x1xf32>
    %248 = arith.divf %246, %247 : vector<8x1xf32>
    %249 = vector.broadcast %241 : vector<8x1xf32> to vector<8x32xf32>
    %250 = arith.subf %233, %249 : vector<8x32xf32>
    %cst_110 = arith.constant 9.99999996E-13 : f32
    %251 = vector.broadcast %cst_110 : f32 to vector<8x1xf32>
    %252 = arith.addf %248, %251 : vector<8x1xf32>
    %253 = math.rsqrt %252 : vector<8x1xf32>
    %254 = vector.broadcast %253 : vector<8x1xf32> to vector<8x32xf32>
    %255 = arith.mulf %250, %254 : vector<8x32xf32>
    %256 = vector.broadcast %235 : vector<1x32xf32> to vector<8x32xf32>
    %257 = arith.mulf %255, %256 : vector<8x32xf32>
    %258 = vector.broadcast %237 : vector<1x32xf32> to vector<8x32xf32>
    %259 = arith.addf %257, %258 : vector<8x32xf32>
    %c1_111 = arith.constant 1 : index
    %c0_112 = arith.constant 0 : index
    %c0_113 = arith.constant 0 : index
    %260 = vector.load %arg11[%c1_111, %c0_112, %c0_113] : memref<2x32x64xbf16, #tpu.memory_space<vmem>>, vector<1x32x64xbf16>
    %261 = vector.shape_cast %260 : vector<1x32x64xbf16> to vector<32x64xbf16>
    %c1_114 = arith.constant 1 : index
    %c0_115 = arith.constant 0 : index
    %c0_116 = arith.constant 0 : index
    %262 = vector.load %arg12[%c1_114, %c0_115, %c0_116] : memref<2x1x64xf32, #tpu.memory_space<vmem>>, vector<1x1x64xf32>
    %263 = vector.shape_cast %262 : vector<1x1x64xf32> to vector<1x64xf32>
    %264 = arith.truncf %259 : vector<8x32xf32> to vector<8x32xbf16>
    %cst_117 = arith.constant dense<0.000000e+00> : vector<8x64xf32>
    %265 = tpu.matmul %264, %261, %cst_117 {dimension_numbers = #tpu.dot_dimension_numbers<[1], [0], [0], [1], [0, 0, 1, 1], [], []>} : vector<8x32xbf16>, vector<32x64xbf16>, vector<8x64xf32> -> vector<8x64xf32>
    %266 = vector.broadcast %263 : vector<1x64xf32> to vector<8x64xf32>
    %267 = arith.addf %265, %266 : vector<8x64xf32>
    %268 = arith.mulf %267, %267 : vector<8x64xf32>
    %269 = arith.mulf %267, %268 : vector<8x64xf32>
    %cst_118 = arith.constant 4.471500e-02 : f32
    %270 = vector.broadcast %cst_118 : f32 to vector<8x64xf32>
    %271 = arith.mulf %270, %269 : vector<8x64xf32>
    %272 = arith.addf %267, %271 : vector<8x64xf32>
    %cst_119 = arith.constant 0.797884583 : f32
    %273 = vector.broadcast %cst_119 : f32 to vector<8x64xf32>
    %274 = arith.mulf %273, %272 : vector<8x64xf32>
    %275 = math.tanh %274 : vector<8x64xf32>
    %cst_120 = arith.constant 1.000000e+00 : f32
    %276 = vector.broadcast %cst_120 : f32 to vector<8x64xf32>
    %277 = arith.addf %276, %275 : vector<8x64xf32>
    %cst_121 = arith.constant 5.000000e-01 : f32
    %278 = vector.broadcast %cst_121 : f32 to vector<8x64xf32>
    %279 = arith.mulf %278, %277 : vector<8x64xf32>
    %280 = arith.mulf %267, %279 : vector<8x64xf32>
    %c1_122 = arith.constant 1 : index
    %c0_123 = arith.constant 0 : index
    %c0_124 = arith.constant 0 : index
    %281 = vector.load %arg13[%c1_122, %c0_123, %c0_124] : memref<2x64x32xbf16, #tpu.memory_space<vmem>>, vector<1x64x32xbf16>
    %282 = vector.shape_cast %281 : vector<1x64x32xbf16> to vector<64x32xbf16>
    %c1_125 = arith.constant 1 : index
    %c0_126 = arith.constant 0 : index
    %c0_127 = arith.constant 0 : index
    %283 = vector.load %arg14[%c1_125, %c0_126, %c0_127] : memref<2x1x32xf32, #tpu.memory_space<vmem>>, vector<1x1x32xf32>
    %284 = vector.shape_cast %283 : vector<1x1x32xf32> to vector<1x32xf32>
    %285 = arith.truncf %280 : vector<8x64xf32> to vector<8x64xbf16>
    %cst_128 = arith.constant dense<0.000000e+00> : vector<8x32xf32>
    %286 = tpu.matmul %285, %282, %cst_128 {dimension_numbers = #tpu.dot_dimension_numbers<[1], [0], [0], [1], [0, 0, 1, 1], [], []>} : vector<8x64xbf16>, vector<64x32xbf16>, vector<8x32xf32> -> vector<8x32xf32>
    %287 = vector.broadcast %284 : vector<1x32xf32> to vector<8x32xf32>
    %288 = arith.addf %286, %287 : vector<8x32xf32>
    %289 = arith.addf %259, %288 : vector<8x32xf32>
    %c1_129 = arith.constant 1 : index
    %c0_130 = arith.constant 0 : index
    %c0_131 = arith.constant 0 : index
    %290 = vector.load %arg15[%c1_129, %c0_130, %c0_131] : memref<2x1x32xf32, #tpu.memory_space<vmem>>, vector<1x1x32xf32>
    %291 = vector.shape_cast %290 : vector<1x1x32xf32> to vector<1x32xf32>
    %c1_132 = arith.constant 1 : index
    %c0_133 = arith.constant 0 : index
    %c0_134 = arith.constant 0 : index
    %292 = vector.load %arg16[%c1_132, %c0_133, %c0_134] : memref<2x1x32xf32, #tpu.memory_space<vmem>>, vector<1x1x32xf32>
    %293 = vector.shape_cast %292 : vector<1x1x32xf32> to vector<1x32xf32>
    %cst_135 = arith.constant dense<0.000000e+00> : vector<8xf32>
    %294 = vector.multi_reduction <add>, %289, %cst_135 [1] : vector<8x32xf32> to vector<8xf32>
    %295 = vector.shape_cast %294 : vector<8xf32> to vector<8x1xf32>
    %cst_136 = arith.constant 3.200000e+01 : f32
    %296 = vector.broadcast %cst_136 : f32 to vector<8x1xf32>
    %297 = arith.divf %295, %296 : vector<8x1xf32>
    %298 = vector.broadcast %297 : vector<8x1xf32> to vector<8x32xf32>
    %299 = arith.subf %289, %298 : vector<8x32xf32>
    %300 = arith.mulf %299, %299 : vector<8x32xf32>
    %cst_137 = arith.constant dense<0.000000e+00> : vector<8xf32>
    %301 = vector.multi_reduction <add>, %300, %cst_137 [1] : vector<8x32xf32> to vector<8xf32>
    %302 = vector.shape_cast %301 : vector<8xf32> to vector<8x1xf32>
    %cst_138 = arith.constant 3.200000e+01 : f32
    %303 = vector.broadcast %cst_138 : f32 to vector<8x1xf32>
    %304 = arith.divf %302, %303 : vector<8x1xf32>
    %305 = vector.broadcast %297 : vector<8x1xf32> to vector<8x32xf32>
    %306 = arith.subf %289, %305 : vector<8x32xf32>
    %cst_139 = arith.constant 9.99999996E-13 : f32
    %307 = vector.broadcast %cst_139 : f32 to vector<8x1xf32>
    %308 = arith.addf %304, %307 : vector<8x1xf32>
    %309 = math.rsqrt %308 : vector<8x1xf32>
    %310 = vector.broadcast %309 : vector<8x1xf32> to vector<8x32xf32>
    %311 = arith.mulf %306, %310 : vector<8x32xf32>
    %312 = vector.broadcast %291 : vector<1x32xf32> to vector<8x32xf32>
    %313 = arith.mulf %311, %312 : vector<8x32xf32>
    %314 = vector.broadcast %293 : vector<1x32xf32> to vector<8x32xf32>
    %315 = arith.addf %313, %314 : vector<8x32xf32>
    %316 = vector.extract_strided_slice %315 {offsets = [0, 0], sizes = [1, 32], strides = [1, 1]} : vector<8x32xf32> to vector<1x32xf32>
    %c0_140 = arith.constant 0 : index
    %c0_141 = arith.constant 0 : index
    %317 = vector.load %arg17[%c0_140, %c0_141] : memref<32x32xbf16, #tpu.memory_space<vmem>>, vector<32x32xbf16>
    %c0_142 = arith.constant 0 : index
    %c0_143 = arith.constant 0 : index
    %318 = vector.load %arg18[%c0_142, %c0_143] : memref<1x32xf32, #tpu.memory_space<vmem>>, vector<1x32xf32>
    %319 = arith.truncf %316 : vector<1x32xf32> to vector<1x32xbf16>
    %cst_144 = arith.constant dense<0.000000e+00> : vector<1x32xf32>
    %320 = tpu.matmul %319, %317, %cst_144 {dimension_numbers = #tpu.dot_dimension_numbers<[1], [0], [0], [1], [0, 0, 1, 1], [], []>} : vector<1x32xbf16>, vector<32x32xbf16>, vector<1x32xf32> -> vector<1x32xf32>
    %321 = arith.addf %320, %318 : vector<1x32xf32>
    %322 = math.tanh %321 : vector<1x32xf32>
    %c0_145 = arith.constant 0 : index
    %c0_146 = arith.constant 0 : index
    %323 = vector.load %arg19[%c0_145, %c0_146] : memref<32x2xbf16, #tpu.memory_space<vmem>>, vector<32x2xbf16>
    %c0_147 = arith.constant 0 : index
    %c0_148 = arith.constant 0 : index
    %324 = vector.load %arg20[%c0_147, %c0_148] : memref<1x2xf32, #tpu.memory_space<vmem>>, vector<1x2xf32>
    %325 = arith.truncf %322 : vector<1x32xf32> to vector<1x32xbf16>
    %cst_149 = arith.constant dense<0.000000e+00> : vector<1x2xf32>
    %326 = tpu.matmul %325, %323, %cst_149 {dimension_numbers = #tpu.dot_dimension_numbers<[1], [0], [0], [1], [0, 0, 1, 1], [], []>} : vector<1x32xbf16>, vector<32x2xbf16>, vector<1x2xf32> -> vector<1x2xf32>
    %327 = arith.addf %326, %324 : vector<1x2xf32>
    %c0_150 = arith.constant 0 : index
    %c0_151 = arith.constant 0 : index
    %c0_152 = arith.constant 0 : index
    %328 = vector.load %arg21[%c0_150, %c0_151, %c0_152] : memref<1x1x2xf32, #tpu.memory_space<vmem>>, vector<1x1x2xf32>
    %329 = vector.shape_cast %328 : vector<1x1x2xf32> to vector<1x2xf32>
    %330 = vector.shape_cast %327 : vector<1x2xf32> to vector<1x1x2xf32>
    tpu.vector_store %arg21[%c0_150, %c0_151, %c0_152], %330 {strides = array<i32>} : memref<1x1x2xf32, #tpu.memory_space<vmem>>, vector<1x1x2xf32>,
    return
  }
  func.func @transform_0(%arg0: i32) -> (i32, i32, i32) {
    %c0_i32 = arith.constant 0 : i32
    %c0_i32_0 = arith.constant 0 : i32
    %c0_i32_1 = arith.constant 0 : i32
    return %arg0, %c0_i32, %c0_i32_0 : i32, i32, i32
  }
  func.func @transform_1(%arg0: i32) -> (i32, i32, i32) {
    %c0_i32 = arith.constant 0 : i32
    %c0_i32_0 = arith.constant 0 : i32
    %c0_i32_1 = arith.constant 0 : i32
    return %arg0, %c0_i32, %c0_i32_0 : i32, i32, i32
  }
  func.func @transform_2(%arg0: i32) -> (i32, i32) {
    %c0_i32 = arith.constant 0 : i32
    %c0_i32_0 = arith.constant 0 : i32
    %c0_i32_1 = arith.constant 0 : i32
    return %c0_i32, %c0_i32_0 : i32, i32
  }
  func.func @transform_3(%arg0: i32) -> (i32, i32) {
    %c0_i32 = arith.constant 0 : i32
    %c0_i32_0 = arith.constant 0 : i32
    %c0_i32_1 = arith.constant 0 : i32
    return %c0_i32, %c0_i32_0 : i32, i32
  }
  func.func @transform_4(%arg0: i32) -> (i32, i32, i32) {
    %c0_i32 = arith.constant 0 : i32
    %c0_i32_0 = arith.constant 0 : i32
    %c0_i32_1 = arith.constant 0 : i32
    %c0_i32_2 = arith.constant 0 : i32
    return %c0_i32, %c0_i32_0, %c0_i32_1 : i32, i32, i32
  }
  func.func @transform_5(%arg0: i32) -> (i32, i32, i32) {
    %c0_i32 = arith.constant 0 : i32
    %c0_i32_0 = arith.constant 0 : i32
    %c0_i32_1 = arith.constant 0 : i32
    %c0_i32_2 = arith.constant 0 : i32
    return %c0_i32, %c0_i32_0, %c0_i32_1 : i32, i32, i32
  }
  func.func @transform_6(%arg0: i32) -> (i32, i32, i32) {
    %c0_i32 = arith.constant 0 : i32
    %c0_i32_0 = arith.constant 0 : i32
    %c0_i32_1 = arith.constant 0 : i32
    %c0_i32_2 = arith.constant 0 : i32
    return %c0_i32, %c0_i32_0, %c0_i32_1 : i32, i32, i32
  }
  func.func @transform_7(%arg0: i32) -> (i32, i32, i32) {
    %c0_i32 = arith.constant 0 : i32
    %c0_i32_0 = arith.constant 0 : i32
    %c0_i32_1 = arith.constant 0 : i32
    %c0_i32_2 = arith.constant 0 : i32
    return %c0_i32, %c0_i32_0, %c0_i32_1 : i32, i32, i32
  }
  func.func @transform_8(%arg0: i32) -> (i32, i32, i32) {
    %c0_i32 = arith.constant 0 : i32
    %c0_i32_0 = arith.constant 0 : i32
    %c0_i32_1 = arith.constant 0 : i32
    %c0_i32_2 = arith.constant 0 : i32
    return %c0_i32, %c0_i32_0, %c0_i32_1 : i32, i32, i32
  }
  func.func @transform_9(%arg0: i32) -> (i32, i32, i32) {
    %c0_i32 = arith.constant 0 : i32
    %c0_i32_0 = arith.constant 0 : i32
    %c0_i32_1 = arith.constant 0 : i32
    %c0_i32_2 = arith.constant 0 : i32
    return %c0_i32, %c0_i32_0, %c0_i32_1 : i32, i32, i32
  }
  func.func @transform_10(%arg0: i32) -> (i32, i32, i32) {
    %c0_i32 = arith.constant 0 : i32
    %c0_i32_0 = arith.constant 0 : i32
    %c0_i32_1 = arith.constant 0 : i32
    %c0_i32_2 = arith.constant 0 : i32
    return %c0_i32, %c0_i32_0, %c0_i32_1 : i32, i32, i32
  }
  func.func @transform_11(%arg0: i32) -> (i32, i32, i32) {
    %c0_i32 = arith.constant 0 : i32
    %c0_i32_0 = arith.constant 0 : i32
    %c0_i32_1 = arith.constant 0 : i32
    %c0_i32_2 = arith.constant 0 : i32
    return %c0_i32, %c0_i32_0, %c0_i32_1 : i32, i32, i32
  }
  func.func @transform_12(%arg0: i32) -> (i32, i32, i32) {
    %c0_i32 = arith.constant 0 : i32
    %c0_i32_0 = arith.constant 0 : i32
    %c0_i32_1 = arith.constant 0 : i32
    %c0_i32_2 = arith.constant 0 : i32
    return %c0_i32, %c0_i32_0, %c0_i32_1 : i32, i32, i32
  }
  func.func @transform_13(%arg0: i32) -> (i32, i32, i32) {
    %c0_i32 = arith.constant 0 : i32
    %c0_i32_0 = arith.constant 0 : i32
    %c0_i32_1 = arith.constant 0 : i32
    %c0_i32_2 = arith.constant 0 : i32
    return %c0_i32, %c0_i32_0, %c0_i32_1 : i32, i32, i32
  }
  func.func @transform_14(%arg0: i32) -> (i32, i32, i32) {
    %c0_i32 = arith.constant 0 : i32
    %c0_i32_0 = arith.constant 0 : i32
    %c0_i32_1 = arith.constant 0 : i32
    %c0_i32_2 = arith.constant 0 : i32
    return %c0_i32, %c0_i32_0, %c0_i32_1 : i32, i32, i32
  }
  func.func @transform_15(%arg0: i32) -> (i32, i32, i32) {
    %c0_i32 = arith.constant 0 : i32
    %c0_i32_0 = arith.constant 0 : i32
    %c0_i32_1 = arith.constant 0 : i32
    %c0_i32_2 = arith.constant 0 : i32
    return %c0_i32, %c0_i32_0, %c0_i32_1 : i32, i32, i32
  }
  func.func @transform_16(%arg0: i32) -> (i32, i32) {
    %c0_i32 = arith.constant 0 : i32
    %c0_i32_0 = arith.constant 0 : i32
    %c0_i32_1 = arith.constant 0 : i32
    return %c0_i32, %c0_i32_0 : i32, i32
  }
  func.func @transform_17(%arg0: i32) -> (i32, i32) {
    %c0_i32 = arith.constant 0 : i32
    %c0_i32_0 = arith.constant 0 : i32
    %c0_i32_1 = arith.constant 0 : i32
    return %c0_i32, %c0_i32_0 : i32, i32
  }
  func.func @transform_18(%arg0: i32) -> (i32, i32) {
    %c0_i32 = arith.constant 0 : i32
    %c0_i32_0 = arith.constant 0 : i32
    %c0_i32_1 = arith.constant 0 : i32
    return %c0_i32, %c0_i32_0 : i32, i32
  }
  func.func @transform_19(%arg0: i32) -> (i32, i32) {
    %c0_i32 = arith.constant 0 : i32
    %c0_i32_0 = arith.constant 0 : i32
    %c0_i32_1 = arith.constant 0 : i32
    return %c0_i32, %c0_i32_0 : i32, i32
  }
  func.func @transform_20(%arg0: i32) -> (i32, i32, i32) {
    %c0_i32 = arith.constant 0 : i32
    %c0_i32_0 = arith.constant 0 : i32
    %c0_i32_1 = arith.constant 0 : i32
    return %arg0, %c0_i32, %c0_i32_0 : i32, i32, i32
  }
}

</mosaic_0001>

<llo_original>
// kernel: rank_model_forward.1
$region0: #{rank_model_forward.1}
  #allocation0 [shape = 'u32[]', space=smem, size = 0x4, offset = 0x4, fixed_abs, tag = 'smem constant byte address 0x4 - core index']
  #allocation1 [shape = 'u32[144,128]{1,0:T(1,128)}', space=vmem, size = 0x12000, scoped, tag = 'internal scratch']
  %s0 = inlined_call_operand.vmem [shape: f32[2,8,32], index: 0, kind: input, shape index: {}]
  %s1 = inlined_call_operand.vmem [shape: f32[2,1,8], index: 1, kind: input, shape index: {}]
  %s2 = inlined_call_operand.vmem [shape: f32[1,32], index: 2, kind: input, shape index: {}]
  %s3 = inlined_call_operand.vmem [shape: f32[1,32], index: 3, kind: input, shape index: {}]
  %s4 = inlined_call_operand.vmem [shape: bf16[2,32,96], index: 4, kind: input, shape index: {}]
  %s5 = inlined_call_operand.vmem [shape: f32[2,1,96], index: 5, kind: input, shape index: {}]
  %s6 = inlined_call_operand.vmem [shape: bf16[2,32,32], index: 6, kind: input, shape index: {}]
  %s7 = inlined_call_operand.vmem [shape: f32[2,1,32], index: 7, kind: input, shape index: {}]
  %s8 = inlined_call_operand.vmem [shape: f32[2,1,32], index: 8, kind: input, shape index: {}]
  %s9 = inlined_call_operand.vmem [shape: f32[2,1,32], index: 9, kind: input, shape index: {}]
  %s10 = inlined_call_operand.vmem [shape: bf16[2,32,64], index: 10, kind: input, shape index: {}]
  %s11 = inlined_call_operand.vmem [shape: f32[2,1,64], index: 11, kind: input, shape index: {}]
  %s12 = inlined_call_operand.vmem [shape: bf16[2,64,32], index: 12, kind: input, shape index: {}]
  %s13 = inlined_call_operand.vmem [shape: f32[2,1,32], index: 13, kind: input, shape index: {}]
  %s14 = inlined_call_operand.vmem [shape: f32[2,1,32], index: 14, kind: input, shape index: {}]
  %s15 = inlined_call_operand.vmem [shape: f32[2,1,32], index: 15, kind: input, shape index: {}]
  %s16 = inlined_call_operand.vmem [shape: bf16[32,32], index: 16, kind: input, shape index: {}]
  %s17 = inlined_call_operand.vmem [shape: f32[1,32], index: 17, kind: input, shape index: {}]
  %s18 = inlined_call_operand.vmem [shape: bf16[32,2], index: 18, kind: input, shape index: {}]
  %s19 = inlined_call_operand.vmem [shape: f32[1,2], index: 19, kind: input, shape index: {}]
  %s20 = inlined_call_operand.hbm [shape: f32[2,1,2], index: 20, kind: output, shape index: {}]
  %s21 = sld [smem:[#allocation0]]
  $region113: #{rank_model_forward.1} parent=0
    _
  %s23 = ssub.s32 1, %s21
  %s24 = scalar_select 0, %s23, %s21
  $region1: #{rank_model_forward.1} parent=0
    #allocation2 [shape = 'u8[1024]{0}', space=vmem, size = 0x400, scoped, tag = 'output window, operand 0']
    #allocation3 [shape = 's32[2]{0}', space=sflag, size = 0x8, scoped, tag = 'scoped memory for rank_model_forward.1']
    %25 = vsyncpa [#allocation3], 0
    %s26 = scalar_lea.sflag [#allocation3], 1
    %27 = vsyncpa %s26, 0
    loop: start=0, step=1, limit=4
    $region2: #{rank_model_forward.1} parent=1 // loop_pre_header
      _
    $region3: #{rank_model_forward.1} parent=1 // loop_header
      %s29 = sphi 0, %s33
      %p30 = scmp.ge.s32.totalorder %s29, 4
      %s39 = sphi 0, %s41
      %s42 = sphi 0, %s39
      %s43 = sphi 0, %s42
      %s59 = sphi 0, %s43
      %s65 = sphi 0, %s67
      %s68 = sphi 0, %s65
      %s69 = sphi 0, %s68
      %s85 = sphi 0, %s69
      %s89 = sphi 0, %s89
      %s91 = sphi 0, %s89
      %s92 = sphi 0, %s91
      %s106 = sphi 0, %s92
      %s110 = sphi 0, %s110
      %s112 = sphi 0, %s110
      %s113 = sphi 0, %s112
      %s127 = sphi 0, %s113
      %s131 = sphi 0, %s131
      %s133 = sphi 0, %s131
      %s134 = sphi 0, %s133
      %s148 = sphi 0, %s134
      %s152 = sphi 0, %s152
      %s154 = sphi 0, %s152
      %s155 = sphi 0, %s154
      %s169 = sphi 0, %s155
      %s173 = sphi 0, %s173
      %s175 = sphi 0, %s173
      %s176 = sphi 0, %s175
      %s190 = sphi 0, %s176
      %s194 = sphi 0, %s194
      %s196 = sphi 0, %s194
      %s197 = sphi 0, %s196
      %s211 = sphi 0, %s197
      %s215 = sphi 0, %s215
      %s217 = sphi 0, %s215
      %s218 = sphi 0, %s217
      %s232 = sphi 0, %s218
      %s236 = sphi 0, %s236
      %s238 = sphi 0, %s236
      %s239 = sphi 0, %s238
      %s253 = sphi 0, %s239
      %s257 = sphi 0, %s257
      %s259 = sphi 0, %s257
      %s260 = sphi 0, %s259
      %s274 = sphi 0, %s260
      %s278 = sphi 0, %s278
      %s280 = sphi 0, %s278
      %s281 = sphi 0, %s280
      %s295 = sphi 0, %s281
      %s299 = sphi 0, %s299
      %s301 = sphi 0, %s299
      %s302 = sphi 0, %s301
      %s316 = sphi 0, %s302
      %s320 = sphi 0, %s320
      %s322 = sphi 0, %s320
      %s323 = sphi 0, %s322
      %s337 = sphi 0, %s323
      %s341 = sphi 0, %s341
      %s343 = sphi 0, %s341
      %s344 = sphi 0, %s343
      %s358 = sphi 0, %s344
      %s362 = sphi 0, %s362
      %s364 = sphi 0, %s362
      %s365 = sphi 0, %s364
      %s379 = sphi 0, %s365
      %s383 = sphi 0, %s383
      %s385 = sphi 0, %s383
      %s386 = sphi 0, %s385
      %s400 = sphi 0, %s386
      %s404 = sphi 0, %s404
      %s406 = sphi 0, %s404
      %s407 = sphi 0, %s406
      %s421 = sphi 0, %s407
      %s425 = sphi 0, %s425
      %s427 = sphi 0, %s425
      %s428 = sphi 0, %s427
      %s442 = sphi 0, %s428
      %s446 = sphi 0, %s446
      %s448 = sphi 0, %s446
      %s449 = sphi 0, %s448
      %s463 = sphi 0, %s449
      %s469 = sphi 0, %s471
      %s472 = sphi 0, %s469
      %s473 = sphi 0, %s472
      %s489 = sphi 0, %s473
    $region4: #{rank_model_forward.1} parent=1 // loop_header_branch
      %32 = sbr.rel (%p30) target = $region8
    $region5: #{rank_model_forward.1} parent=1 // loop_body
      %s34 = ssub.s32 %s29, 1
      %s35 = ssub.s32 %s29, 2
      %s36 = sadd.s32 %s29, 1
      %s37 = ssub.s32 %s29, %s36
      %p38 = scmp.eq.s32.totalorder %s37, 0
      %s40 = sadd.s32 %s39, 1
      %s41 = scalar_select %p38, %s39, %s40
      %p44 = pneg %p38
      %p45 = scmp.eq.s32.totalorder %s29, 1
      %p46 = por %p44, %p45
      %p47 = scmp.ne.s32.totalorder %s39, %s42
      %p48 = scmp.eq.s32.totalorder %s29, 0
      %p49 = por %p47, %p48
      %p50 = scmp.ne.s32.totalorder %s39, %s42
      %p51 = scmp.eq.s32.totalorder %s34, 1
      %p52 = por %p50, %p51
      %p53 = scmp.ne.s32.totalorder %s42, %s43
      %p54 = scmp.eq.s32.totalorder %s34, 0
      %p55 = por %p53, %p54
      %p56 = scmp.ne.s32.totalorder %s42, %s43
      %p57 = scmp.eq.s32.totalorder %s35, 1
      %p58 = por %p56, %p57
      %p60 = scmp.ne.s32.totalorder %s43, %s59
      %p61 = scmp.eq.s32.totalorder %s35, 0
      %p62 = por %p60, %p61
      %s63 = ssub.s32 %s29, %s36
      %p64 = scmp.eq.s32.totalorder %s63, 0
      %s66 = sadd.s32 %s65, 1
      %s67 = scalar_select %p64, %s65, %s66
      %p70 = pneg %p64
      %p71 = scmp.eq.s32.totalorder %s29, 1
      %p72 = por %p70, %p71
      %p73 = scmp.ne.s32.totalorder %s65, %s68
      %p74 = scmp.eq.s32.totalorder %s29, 0
      %p75 = por %p73, %p74
      %p76 = scmp.ne.s32.totalorder %s65, %s68
      %p77 = scmp.eq.s32.totalorder %s34, 1
      %p78 = por %p76, %p77
      %p79 = scmp.ne.s32.totalorder %s68, %s69
      %p80 = scmp.eq.s32.totalorder %s34, 0
      %p81 = por %p79, %p80
      %p82 = scmp.ne.s32.totalorder %s68, %s69
      %p83 = scmp.eq.s32.totalorder %s35, 1
      %p84 = por %p82, %p83
      %p86 = scmp.ne.s32.totalorder %s69, %s85
      %p87 = scmp.eq.s32.totalorder %s35, 0
      %p88 = por %p86, %p87
      %s90 = sadd.s32 %s89, 1
      %p93 = scmp.eq.s32.totalorder %s29, 1
      %p94 = scmp.ne.s32.totalorder %s89, %s91
      %p95 = scmp.eq.s32.totalorder %s29, 0
      %p96 = por %p94, %p95
      %p97 = scmp.ne.s32.totalorder %s89, %s91
      %p98 = scmp.eq.s32.totalorder %s34, 1
      %p99 = por %p97, %p98
      %p100 = scmp.ne.s32.totalorder %s91, %s92
      %p101 = scmp.eq.s32.totalorder %s34, 0
      %p102 = por %p100, %p101
      %p103 = scmp.ne.s32.totalorder %s91, %s92
      %p104 = scmp.eq.s32.totalorder %s35, 1
      %p105 = por %p103, %p104
      %p107 = scmp.ne.s32.totalorder %s92, %s106
      %p108 = scmp.eq.s32.totalorder %s35, 0
      %p109 = por %p107, %p108
      %s111 = sadd.s32 %s110, 1
      %p114 = scmp.eq.s32.totalorder %s29, 1
      %p115 = scmp.ne.s32.totalorder %s110, %s112
      %p116 = scmp.eq.s32.totalorder %s29, 0
      %p117 = por %p115, %p116
      %p118 = scmp.ne.s32.totalorder %s110, %s112
      %p119 = scmp.eq.s32.totalorder %s34, 1
      %p120 = por %p118, %p119
      %p121 = scmp.ne.s32.totalorder %s112, %s113
      %p122 = scmp.eq.s32.totalorder %s34, 0
      %p123 = por %p121, %p122
      %p124 = scmp.ne.s32.totalorder %s112, %s113
      %p125 = scmp.eq.s32.totalorder %s35, 1
      %p126 = por %p124, %p125
      %p128 = scmp.ne.s32.totalorder %s113, %s127
      %p129 = scmp.eq.s32.totalorder %s35, 0
      %p130 = por %p128, %p129
      %s132 = sadd.s32 %s131, 1
      %p135 = scmp.eq.s32.totalorder %s29, 1
      %p136 = scmp.ne.s32.totalorder %s131, %s133
      %p137 = scmp.eq.s32.totalorder %s29, 0
      %p138 = por %p136, %p137
      %p139 = scmp.ne.s32.totalorder %s131, %s133
      %p140 = scmp.eq.s32.totalorder %s34, 1
      %p141 = por %p139, %p140
      %p142 = scmp.ne.s32.totalorder %s133, %s134
      %p143 = scmp.eq.s32.totalorder %s34, 0
      %p144 = por %p142, %p143
      %p145 = scmp.ne.s32.totalorder %s133, %s134
      %p146 = scmp.eq.s32.totalorder %s35, 1
      %p147 = por %p145, %p146
      %p149 = scmp.ne.s32.totalorder %s134, %s148
      %p150 = scmp.eq.s32.totalorder %s35, 0
      %p151 = por %p149, %p150
      %s153 = sadd.s32 %s152, 1
      %p156 = scmp.eq.s32.totalorder %s29, 1
      %p157 = scmp.ne.s32.totalorder %s152, %s154
      %p158 = scmp.eq.s32.totalorder %s29, 0
      %p159 = por %p157, %p158
      %p160 = scmp.ne.s32.totalorder %s152, %s154
      %p161 = scmp.eq.s32.totalorder %s34, 1
      %p162 = por %p160, %p161
      %p163 = scmp.ne.s32.totalorder %s154, %s155
      %p164 = scmp.eq.s32.totalorder %s34, 0
      %p165 = por %p163, %p164
      %p166 = scmp.ne.s32.totalorder %s154, %s155
      %p167 = scmp.eq.s32.totalorder %s35, 1
      %p168 = por %p166, %p167
      %p170 = scmp.ne.s32.totalorder %s155, %s169
      %p171 = scmp.eq.s32.totalorder %s35, 0
      %p172 = por %p170, %p171
      %s174 = sadd.s32 %s173, 1
      %p177 = scmp.eq.s32.totalorder %s29, 1
      %p178 = scmp.ne.s32.totalorder %s173, %s175
      %p179 = scmp.eq.s32.totalorder %s29, 0
      %p180 = por %p178, %p179
      %p181 = scmp.ne.s32.totalorder %s173, %s175
      %p182 = scmp.eq.s32.totalorder %s34, 1
      %p183 = por %p181, %p182
      %p184 = scmp.ne.s32.totalorder %s175, %s176
      %p185 = scmp.eq.s32.totalorder %s34, 0
      %p186 = por %p184, %p185
      %p187 = scmp.ne.s32.totalorder %s175, %s176
      %p188 = scmp.eq.s32.totalorder %s35, 1
      %p189 = por %p187, %p188
      %p191 = scmp.ne.s32.totalorder %s176, %s190
      %p192 = scmp.eq.s32.totalorder %s35, 0
      %p193 = por %p191, %p192
      %s195 = sadd.s32 %s194, 1
      %p198 = scmp.eq.s32.totalorder %s29, 1
      %p199 = scmp.ne.s32.totalorder %s194, %s196
      %p200 = scmp.eq.s32.totalorder %s29, 0
      %p201 = por %p199, %p200
      %p202 = scmp.ne.s32.totalorder %s194, %s196
      %p203 = scmp.eq.s32.totalorder %s34, 1
      %p204 = por %p202, %p203
      %p205 = scmp.ne.s32.totalorder %s196, %s197
      %p206 = scmp.eq.s32.totalorder %s34, 0
      %p207 = por %p205, %p206
      %p208 = scmp.ne.s32.totalorder %s196, %s197
      %p209 = scmp.eq.s32.totalorder %s35, 1
      %p210 = por %p208, %p209
      %p212 = scmp.ne.s32.totalorder %s197, %s211
      %p213 = scmp.eq.s32.totalorder %s35, 0
      %p214 = por %p212, %p213
      %s216 = sadd.s32 %s215, 1
      %p219 = scmp.eq.s32.totalorder %s29, 1
      %p220 = scmp.ne.s32.totalorder %s215, %s217
      %p221 = scmp.eq.s32.totalorder %s29, 0
      %p222 = por %p220, %p221
      %p223 = scmp.ne.s32.totalorder %s215, %s217
      %p224 = scmp.eq.s32.totalorder %s34, 1
      %p225 = por %p223, %p224
      %p226 = scmp.ne.s32.totalorder %s217, %s218
      %p227 = scmp.eq.s32.totalorder %s34, 0
      %p228 = por %p226, %p227
      %p229 = scmp.ne.s32.totalorder %s217, %s218
      %p230 = scmp.eq.s32.totalorder %s35, 1
      %p231 = por %p229, %p230
      %p233 = scmp.ne.s32.totalorder %s218, %s232
      %p234 = scmp.eq.s32.totalorder %s35, 0
      %p235 = por %p233, %p234
      %s237 = sadd.s32 %s236, 1
      %p240 = scmp.eq.s32.totalorder %s29, 1
      %p241 = scmp.ne.s32.totalorder %s236, %s238
      %p242 = scmp.eq.s32.totalorder %s29, 0
      %p243 = por %p241, %p242
      %p244 = scmp.ne.s32.totalorder %s236, %s238
      %p245 = scmp.eq.s32.totalorder %s34, 1
      %p246 = por %p244, %p245
      %p247 = scmp.ne.s32.totalorder %s238, %s239
      %p248 = scmp.eq.s32.totalorder %s34, 0
      %p249 = por %p247, %p248
      %p250 = scmp.ne.s32.totalorder %s238, %s239
      %p251 = scmp.eq.s32.totalorder %s35, 1
      %p252 = por %p250, %p251
      %p254 = scmp.ne.s32.totalorder %s239, %s253
      %p255 = scmp.eq.s32.totalorder %s35, 0
      %p256 = por %p254, %p255
      %s258 = sadd.s32 %s257, 1
      %p261 = scmp.eq.s32.totalorder %s29, 1
      %p262 = scmp.ne.s32.totalorder %s257, %s259
      %p263 = scmp.eq.s32.totalorder %s29, 0
      %p264 = por %p262, %p263
      %p265 = scmp.ne.s32.totalorder %s257, %s259
      %p266 = scmp.eq.s32.totalorder %s34, 1
      %p267 = por %p265, %p266
      %p268 = scmp.ne.s32.totalorder %s259, %s260
      %p269 = scmp.eq.s32.totalorder %s34, 0
      %p270 = por %p268, %p269
      %p271 = scmp.ne.s32.totalorder %s259, %s260
      %p272 = scmp.eq.s32.totalorder %s35, 1
      %p273 = por %p271, %p272
      %p275 = scmp.ne.s32.totalorder %s260, %s274
      %p276 = scmp.eq.s32.totalorder %s35, 0
      %p277 = por %p275, %p276
      %s279 = sadd.s32 %s278, 1
      %p282 = scmp.eq.s32.totalorder %s29, 1
      %p283 = scmp.ne.s32.totalorder %s278, %s280
      %p284 = scmp.eq.s32.totalorder %s29, 0
      %p285 = por %p283, %p284
      %p286 = scmp.ne.s32.totalorder %s278, %s280
      %p287 = scmp.eq.s32.totalorder %s34, 1
      %p288 = por %p286, %p287
      %p289 = scmp.ne.s32.totalorder %s280, %s281
      %p290 = scmp.eq.s32.totalorder %s34, 0
      %p291 = por %p289, %p290
      %p292 = scmp.ne.s32.totalorder %s280, %s281
      %p293 = scmp.eq.s32.totalorder %s35, 1
      %p294 = por %p292, %p293
      %p296 = scmp.ne.s32.totalorder %s281, %s295
      %p297 = scmp.eq.s32.totalorder %s35, 0
      %p298 = por %p296, %p297
      %s300 = sadd.s32 %s299, 1
      %p303 = scmp.eq.s32.totalorder %s29, 1
      %p304 = scmp.ne.s32.totalorder %s299, %s301
      %p305 = scmp.eq.s32.totalorder %s29, 0
      %p306 = por %p304, %p305
      %p307 = scmp.ne.s32.totalorder %s299, %s301
      %p308 = scmp.eq.s32.totalorder %s34, 1
      %p309 = por %p307, %p308
      %p310 = scmp.ne.s32.totalorder %s301, %s302
      %p311 = scmp.eq.s32.totalorder %s34, 0
      %p312 = por %p310, %p311
      %p313 = scmp.ne.s32.totalorder %s301, %s302
      %p314 = scmp.eq.s32.totalorder %s35, 1
      %p315 = por %p313, %p314
      %p317 = scmp.ne.s32.totalorder %s302, %s316
      %p318 = scmp.eq.s32.totalorder %s35, 0
      %p319 = por %p317, %p318
      %s321 = sadd.s32 %s320, 1
      %p324 = scmp.eq.s32.totalorder %s29, 1
      %p325 = scmp.ne.s32.totalorder %s320, %s322
      %p326 = scmp.eq.s32.totalorder %s29, 0
      %p327 = por %p325, %p326
      %p328 = scmp.ne.s32.totalorder %s320, %s322
      %p329 = scmp.eq.s32.totalorder %s34, 1
      %p330 = por %p328, %p329
      %p331 = scmp.ne.s32.totalorder %s322, %s323
      %p332 = scmp.eq.s32.totalorder %s34, 0
      %p333 = por %p331, %p332
      %p334 = scmp.ne.s32.totalorder %s322, %s323
      %p335 = scmp.eq.s32.totalorder %s35, 1
      %p336 = por %p334, %p335
      %p338 = scmp.ne.s32.totalorder %s323, %s337
      %p339 = scmp.eq.s32.totalorder %s35, 0
      %p340 = por %p338, %p339
      %s342 = sadd.s32 %s341, 1
      %p345 = scmp.eq.s32.totalorder %s29, 1
      %p346 = scmp.ne.s32.totalorder %s341, %s343
      %p347 = scmp.eq.s32.totalorder %s29, 0
      %p348 = por %p346, %p347
      %p349 = scmp.ne.s32.totalorder %s341, %s343
      %p350 = scmp.eq.s32.totalorder %s34, 1
      %p351 = por %p349, %p350
      %p352 = scmp.ne.s32.totalorder %s343, %s344
      %p353 = scmp.eq.s32.totalorder %s34, 0
      %p354 = por %p352, %p353
      %p355 = scmp.ne.s32.totalorder %s343, %s344
      %p356 = scmp.eq.s32.totalorder %s35, 1
      %p357 = por %p355, %p356
      %p359 = scmp.ne.s32.totalorder %s344, %s358
      %p360 = scmp.eq.s32.totalorder %s35, 0
      %p361 = por %p359, %p360
      %s363 = sadd.s32 %s362, 1
      %p366 = scmp.eq.s32.totalorder %s29, 1
      %p367 = scmp.ne.s32.totalorder %s362, %s364
      %p368 = scmp.eq.s32.totalorder %s29, 0
      %p369 = por %p367, %p368
      %p370 = scmp.ne.s32.totalorder %s362, %s364
      %p371 = scmp.eq.s32.totalorder %s34, 1
      %p372 = por %p370, %p371
      %p373 = scmp.ne.s32.totalorder %s364, %s365
      %p374 = scmp.eq.s32.totalorder %s34, 0
      %p375 = por %p373, %p374
      %p376 = scmp.ne.s32.totalorder %s364, %s365
      %p377 = scmp.eq.s32.totalorder %s35, 1
      %p378 = por %p376, %p377
      %p380 = scmp.ne.s32.totalorder %s365, %s379
      %p381 = scmp.eq.s32.totalorder %s35, 0
      %p382 = por %p380, %p381
      %s384 = sadd.s32 %s383, 1
      %p387 = scmp.eq.s32.totalorder %s29, 1
      %p388 = scmp.ne.s32.totalorder %s383, %s385
      %p389 = scmp.eq.s32.totalorder %s29, 0
      %p390 = por %p388, %p389
      %p391 = scmp.ne.s32.totalorder %s383, %s385
      %p392 = scmp.eq.s32.totalorder %s34, 1
      %p393 = por %p391, %p392
      %p394 = scmp.ne.s32.totalorder %s385, %s386
      %p395 = scmp.eq.s32.totalorder %s34, 0
      %p396 = por %p394, %p395
      %p397 = scmp.ne.s32.totalorder %s385, %s386
      %p398 = scmp.eq.s32.totalorder %s35, 1
      %p399 = por %p397, %p398
      %p401 = scmp.ne.s32.totalorder %s386, %s400
      %p402 = scmp.eq.s32.totalorder %s35, 0
      %p403 = por %p401, %p402
      %s405 = sadd.s32 %s404, 1
      %p408 = scmp.eq.s32.totalorder %s29, 1
      %p409 = scmp.ne.s32.totalorder %s404, %s406
      %p410 = scmp.eq.s32.totalorder %s29, 0
      %p411 = por %p409, %p410
      %p412 = scmp.ne.s32.totalorder %s404, %s406
      %p413 = scmp.eq.s32.totalorder %s34, 1
      %p414 = por %p412, %p413
      %p415 = scmp.ne.s32.totalorder %s406, %s407
      %p416 = scmp.eq.s32.totalorder %s34, 0
      %p417 = por %p415, %p416
      %p418 = scmp.ne.s32.totalorder %s406, %s407
      %p419 = scmp.eq.s32.totalorder %s35, 1
      %p420 = por %p418, %p419
      %p422 = scmp.ne.s32.totalorder %s407, %s421
      %p423 = scmp.eq.s32.totalorder %s35, 0
      %p424 = por %p422, %p423
      %s426 = sadd.s32 %s425, 1
      %p429 = scmp.eq.s32.totalorder %s29, 1
      %p430 = scmp.ne.s32.totalorder %s425, %s427
      %p431 = scmp.eq.s32.totalorder %s29, 0
      %p432 = por %p430, %p431
      %p433 = scmp.ne.s32.totalorder %s425, %s427
      %p434 = scmp.eq.s32.totalorder %s34, 1
      %p435 = por %p433, %p434
      %p436 = scmp.ne.s32.totalorder %s427, %s428
      %p437 = scmp.eq.s32.totalorder %s34, 0
      %p438 = por %p436, %p437
      %p439 = scmp.ne.s32.totalorder %s427, %s428
      %p440 = scmp.eq.s32.totalorder %s35, 1
      %p441 = por %p439, %p440
      %p443 = scmp.ne.s32.totalorder %s428, %s442
      %p444 = scmp.eq.s32.totalorder %s35, 0
      %p445 = por %p443, %p444
      %s447 = sadd.s32 %s446, 1
      %p450 = scmp.eq.s32.totalorder %s29, 1
      %p451 = scmp.ne.s32.totalorder %s446, %s448
      %p452 = scmp.eq.s32.totalorder %s29, 0
      %p453 = por %p451, %p452
      %p454 = scmp.ne.s32.totalorder %s446, %s448
      %p455 = scmp.eq.s32.totalorder %s34, 1
      %p456 = por %p454, %p455
      %p457 = scmp.ne.s32.totalorder %s448, %s449
      %p458 = scmp.eq.s32.totalorder %s34, 0
      %p459 = por %p457, %p458
      %p460 = scmp.ne.s32.totalorder %s448, %s449
      %p461 = scmp.eq.s32.totalorder %s35, 1
      %p462 = por %p460, %p461
      %p464 = scmp.ne.s32.totalorder %s449, %s463
      %p465 = scmp.eq.s32.totalorder %s35, 0
      %p466 = por %p464, %p465
      %s467 = ssub.s32 %s29, %s36
      %p468 = scmp.eq.s32.totalorder %s467, 0
      %s470 = sadd.s32 %s469, 1
      %s471 = scalar_select %p468, %s469, %s470
      %p474 = pneg %p468
      %p475 = scmp.eq.s32.totalorder %s29, 1
      %p476 = por %p474, %p475
      %p477 = scmp.ne.s32.totalorder %s469, %s472
      %p478 = scmp.eq.s32.totalorder %s29, 0
      %p479 = por %p477, %p478
      %p480 = scmp.ne.s32.totalorder %s469, %s472
      %p481 = scmp.eq.s32.totalorder %s34, 1
      %p482 = por %p480, %p481
      %p483 = scmp.ne.s32.totalorder %s472, %s473
      %p484 = scmp.eq.s32.totalorder %s34, 0
      %p485 = por %p483, %p484
      %p486 = scmp.ne.s32.totalorder %s472, %s473
      %p487 = scmp.eq.s32.totalorder %s35, 1
      %p488 = por %p486, %p487
      %p490 = scmp.ne.s32.totalorder %s473, %s489
      %p491 = scmp.eq.s32.totalorder %s35, 0
      %p492 = por %p490, %p491
      %p493 = scmp.le.s32.totalorder 1, %s29
      %p494 = scmp.lt.s32.totalorder %s29, 3
      %p495 = pnand %p493, %p494
      %p496 = pneg %p495
      // Predicated region
      $region9: #{rank_model_forward.1} parent=5 // pred_check
        _
      $region10: #{rank_model_forward.1} parent=5 // pred_check_branch
        %498 = sbr.rel (%p495) target = $region12
      $region11: #{rank_model_forward.1} parent=5 // pred_region
        %s499 = ssub.s32 %s29, 1
        // Predicated region
        $region13: #{rank_model_forward.1} parent=11 // pred_check
          %p500 = pneg %p102
        $region14: #{rank_model_forward.1} parent=11 // pred_check_branch
          %502 = sbr.rel (%p500) target = $region16
        $region15: #{rank_model_forward.1} parent=11 // pred_region
          _
        $region16: #{rank_model_forward.1} parent=11 // pred_fallthru
          _
        // Predicated region
        $region17: #{rank_model_forward.1} parent=11 // pred_check
          %p503 = pneg %p123
        $region18: #{rank_model_forward.1} parent=11 // pred_check_branch
          %505 = sbr.rel (%p503) target = $region20
        $region19: #{rank_model_forward.1} parent=11 // pred_region
          _
        $region20: #{rank_model_forward.1} parent=11 // pred_fallthru
          _
        // Predicated region
        $region21: #{rank_model_forward.1} parent=11 // pred_check
          %p506 = pneg %p144
        $region22: #{rank_model_forward.1} parent=11 // pred_check_branch
          %508 = sbr.rel (%p506) target = $region24
        $region23: #{rank_model_forward.1} parent=11 // pred_region
          _
        $region24: #{rank_model_forward.1} parent=11 // pred_fallthru
          _
        // Predicated region
        $region25: #{rank_model_forward.1} parent=11 // pred_check
          %p509 = pneg %p165
        $region26: #{rank_model_forward.1} parent=11 // pred_check_branch
          %511 = sbr.rel (%p509) target = $region28
        $region27: #{rank_model_forward.1} parent=11 // pred_region
          _
        $region28: #{rank_model_forward.1} parent=11 // pred_fallthru
          _
        // Predicated region
        $region29: #{rank_model_forward.1} parent=11 // pred_check
          %p512 = pneg %p186
        $region30: #{rank_model_forward.1} parent=11 // pred_check_branch
          %514 = sbr.rel (%p512) target = $region32
        $region31: #{rank_model_forward.1} parent=11 // pred_region
          _
        $region32: #{rank_model_forward.1} parent=11 // pred_fallthru
          _
        // Predicated region
        $region33: #{rank_model_forward.1} parent=11 // pred_check
          %p515 = pneg %p207
        $region34: #{rank_model_forward.1} parent=11 // pred_check_branch
          %517 = sbr.rel (%p515) target = $region36
        $region35: #{rank_model_forward.1} parent=11 // pred_region
          _
        $region36: #{rank_model_forward.1} parent=11 // pred_fallthru
          _
        // Predicated region
        $region37: #{rank_model_forward.1} parent=11 // pred_check
          %p518 = pneg %p228
        $region38: #{rank_model_forward.1} parent=11 // pred_check_branch
          %520 = sbr.rel (%p518) target = $region40
        $region39: #{rank_model_forward.1} parent=11 // pred_region
          _
        $region40: #{rank_model_forward.1} parent=11 // pred_fallthru
          _
        // Predicated region
        $region41: #{rank_model_forward.1} parent=11 // pred_check
          %p521 = pneg %p249
        $region42: #{rank_model_forward.1} parent=11 // pred_check_branch
          %523 = sbr.rel (%p521) target = $region44
        $region43: #{rank_model_forward.1} parent=11 // pred_region
          _
        $region44: #{rank_model_forward.1} parent=11 // pred_fallthru
          _
        // Predicated region
        $region45: #{rank_model_forward.1} parent=11 // pred_check
          %p524 = pneg %p270
        $region46: #{rank_model_forward.1} parent=11 // pred_check_branch
          %526 = sbr.rel (%p524) target = $region48
        $region47: #{rank_model_forward.1} parent=11 // pred_region
          _
        $region48: #{rank_model_forward.1} parent=11 // pred_fallthru
          _
        // Predicated region
        $region49: #{rank_model_forward.1} parent=11 // pred_check
          %p527 = pneg %p291
        $region50: #{rank_model_forward.1} parent=11 // pred_check_branch
          %529 = sbr.rel (%p527) target = $region52
        $region51: #{rank_model_forward.1} parent=11 // pred_region
          _
        $region52: #{rank_model_forward.1} parent=11 // pred_fallthru
          _
        // Predicated region
        $region53: #{rank_model_forward.1} parent=11 // pred_check
          %p530 = pneg %p312
        $region54: #{rank_model_forward.1} parent=11 // pred_check_branch
          %532 = sbr.rel (%p530) target = $region56
        $region55: #{rank_model_forward.1} parent=11 // pred_region
          _
        $region56: #{rank_model_forward.1} parent=11 // pred_fallthru
          _
        // Predicated region
        $region57: #{rank_model_forward.1} parent=11 // pred_check
          %p533 = pneg %p333
        $region58: #{rank_model_forward.1} parent=11 // pred_check_branch
          %535 = sbr.rel (%p533) target = $region60
        $region59: #{rank_model_forward.1} parent=11 // pred_region
          _
        $region60: #{rank_model_forward.1} parent=11 // pred_fallthru
          _
        // Predicated region
        $region61: #{rank_model_forward.1} parent=11 // pred_check
          %p536 = pneg %p354
        $region62: #{rank_model_forward.1} parent=11 // pred_check_branch
          %538 = sbr.rel (%p536) target = $region64
        $region63: #{rank_model_forward.1} parent=11 // pred_region
          _
        $region64: #{rank_model_forward.1} parent=11 // pred_fallthru
          _
        // Predicated region
        $region65: #{rank_model_forward.1} parent=11 // pred_check
          %p539 = pneg %p375
        $region66: #{rank_model_forward.1} parent=11 // pred_check_branch
          %541 = sbr.rel (%p539) target = $region68
        $region67: #{rank_model_forward.1} parent=11 // pred_region
          _
        $region68: #{rank_model_forward.1} parent=11 // pred_fallthru
          _
        // Predicated region
        $region69: #{rank_model_forward.1} parent=11 // pred_check
          %p542 = pneg %p396
        $region70: #{rank_model_forward.1} parent=11 // pred_check_branch
          %544 = sbr.rel (%p542) target = $region72
        $region71: #{rank_model_forward.1} parent=11 // pred_region
          _
        $region72: #{rank_model_forward.1} parent=11 // pred_fallthru
          _
        // Predicated region
        $region73: #{rank_model_forward.1} parent=11 // pred_check
          %p545 = pneg %p417
        $region74: #{rank_model_forward.1} parent=11 // pred_check_branch
          %547 = sbr.rel (%p545) target = $region76
        $region75: #{rank_model_forward.1} parent=11 // pred_region
          _
        $region76: #{rank_model_forward.1} parent=11 // pred_fallthru
          _
        // Predicated region
        $region77: #{rank_model_forward.1} parent=11 // pred_check
          %p548 = pneg %p438
        $region78: #{rank_model_forward.1} parent=11 // pred_check_branch
          %550 = sbr.rel (%p548) target = $region80
        $region79: #{rank_model_forward.1} parent=11 // pred_region
          _
        $region80: #{rank_model_forward.1} parent=11 // pred_fallthru
          _
        // Predicated region
        $region81: #{rank_model_forward.1} parent=11 // pred_check
          %p551 = pneg %p459
        $region82: #{rank_model_forward.1} parent=11 // pred_check_branch
          %553 = sbr.rel (%p551) target = $region84
        $region83: #{rank_model_forward.1} parent=11 // pred_region
          _
        $region84: #{rank_model_forward.1} parent=11 // pred_fallthru
          _
      $region12: #{rank_model_forward.1} parent=5 // pred_fallthru
        _
      %p554 = scmp.lt.s32.totalorder %s29, 2
      // Predicated region
      $region85: #{rank_model_forward.1} parent=5 // pred_check
        %p555 = pneg %p554
      $region86: #{rank_model_forward.1} parent=5 // pred_check_branch
        %557 = sbr.rel (%p555) target = $region88
      $region87: #{rank_model_forward.1} parent=5 // pred_region
        // Predicated region
        $region89: #{rank_model_forward.1} parent=87 // pred_check
          %p558 = pneg %p49
        $region90: #{rank_model_forward.1} parent=87 // pred_check_branch
          %560 = sbr.rel (%p558) target = $region92
        $region91: #{rank_model_forward.1} parent=87 // pred_region
          %p561 = scmp.lt.s32.totalorder %s29, 1
          %s562 = scalar_select %p561, %s29, 1
          %s563 = smul.addr %s562, 8
          %s564 = scalar_lea.vmem %s0, %s563
        $region92: #{rank_model_forward.1} parent=87 // pred_fallthru
          _
        // Predicated region
        $region93: #{rank_model_forward.1} parent=87 // pred_check
          %p565 = pneg %p75
        $region94: #{rank_model_forward.1} parent=87 // pred_check_branch
          %567 = sbr.rel (%p565) target = $region96
        $region95: #{rank_model_forward.1} parent=87 // pred_region
          %p568 = scmp.lt.s32.totalorder %s29, 1
          %s569 = scalar_select %p568, %s29, 1
          %s570 = scalar_lea.vmem %s1, %s569
        $region96: #{rank_model_forward.1} parent=87 // pred_fallthru
          _
      $region88: #{rank_model_forward.1} parent=5 // pred_fallthru
        _
      %p571 = scmp.le.s32.totalorder 1, %s29
      %p572 = scmp.lt.s32.totalorder %s29, 3
      %p573 = pnand %p571, %p572
      %p574 = pneg %p573
      // Predicated region
      $region97: #{rank_model_forward.1} parent=5 // pred_check
        _
      $region98: #{rank_model_forward.1} parent=5 // pred_check_branch
        %576 = sbr.rel (%p573) target = $region100
      $region99: #{rank_model_forward.1} parent=5 // pred_region
        %s577 = ssub.s32 %s29, 1
        %p578 = scmp.lt.s32.totalorder %s34, 1
        %s579 = scalar_select %p578, %s34, 1
        %s580 = smul.addr %s579, 8
        %s581 = scalar_lea.vmem %s0, %s580
        %p582 = pneg %p55
        %p583 = pneg %p52
        %p584 = scmp.lt.s32.totalorder %s34, 1
        %s585 = scalar_select %p584, %s34, 1
        %s586 = scalar_lea.vmem %s1, %s585
        %p587 = pneg %p81
        %p588 = pneg %p78
        %p589 = pneg %p102
        %p590 = pneg %p99
        %p591 = pneg %p123
        %p592 = pneg %p120
        %p593 = pneg %p144
        %p594 = pneg %p141
        %p595 = pneg %p165
        %p596 = pneg %p162
        %p597 = pneg %p186
        %p598 = pneg %p183
        %p599 = pneg %p207
        %p600 = pneg %p204
        %p601 = pneg %p228
        %p602 = pneg %p225
        %p603 = pneg %p249
        %p604 = pneg %p246
        %p605 = pneg %p270
        %p606 = pneg %p267
        %p607 = pneg %p291
        %p608 = pneg %p288
        %p609 = pneg %p312
        %p610 = pneg %p309
        %p611 = pneg %p333
        %p612 = pneg %p330
        %p613 = pneg %p354
        %p614 = pneg %p351
        %p615 = pneg %p375
        %p616 = pneg %p372
        %p617 = pneg %p396
        %p618 = pneg %p393
        %p619 = pneg %p417
        %p620 = pneg %p414
        %p621 = pneg %p438
        %p622 = pneg %p435
        %p623 = pneg %p459
        %p624 = pneg %p456
        %p625 = pneg %p485
        %p626 = pneg %p482
        %s627 = sand.u32 %s472, 1
        %s628 = scalar_lea.sflag [#allocation3], %s627
        %s629 = sand.u32 %s472, 1
        %s630 = scalar_lea.vmem [#allocation2], %s629
        %p631 = scmp.lt.s32.totalorder %s34, 1
        %s632 = scalar_select %p631, %s34, 1
        %s633 = smul.addr %s632, 8
        %s634 = scalar_lea.vmem %s0, %s633
        %p635 = scmp.lt.s32.totalorder %s34, 1
        %s636 = scalar_select %p635, %s34, 1
        %s637 = scalar_lea.vmem %s1, %s636
        %v639 = vld [vmem:[%s634] sm:$0xff]
        %v640 = vld [vmem:[%s2] sm:$0x1]
        %v641 = vld [vmem:[%s3] sm:$0x1]
        %vm642 = vcmask 261120
        %v643 = vsel %vm642, %v639, 0.0
        %644 = vadd.xlane.f32.xlu0 %v643
        %v645 = vpop.xlane.xlu0 %644
        %v646 = vrcp.pop 32.0
        %v647 = vmul.f32 %v645, %v646
        %v648 = vsub.f32 %v639, %v647
        %v649 = vmul.f32 %v648, %v648
        %v650 = vsel %vm642, %v649, 0.0
        %651 = vadd.xlane.f32.xlu0 %v650
        %v652 = vpop.xlane.xlu0 %651
        %v653 = vmul.f32 %v652, %v646
        %v654 = vadd.f32 %v653, 1e-12
        %v655 = vrsqrt.pop %v654
        %v656 = vmul.f32 %v648, %v655
        %v658 = vlaneseq
        %v659 = vshrl.u32 %v658, 7
        %v660 = vsub.s32 0, %v659
        %v661 = vrot.slane %v640, %v660
        %v663 = vmul.f32 %v656, %v661
        %v665 = vlaneseq
        %v666 = vshrl.u32 %v665, 7
        %v667 = vsub.s32 0, %v666
        %v668 = vrot.slane %v641, %v667
        %v670 = vadd.f32 %v663, %v668
        %v671 = vld [vmem:[%s637] sm:$0x1]
        %v672 = vld [vmem:[%s4] sm:$0xf]
        %v673 = vld [vmem:[%s4 + $0x4] sm:$0xf]
        %v674 = vld [vmem:[%s4 + $0x8] sm:$0xf]
        %v675 = vld [vmem:[%s4 + $0xc] sm:$0xf]
        %v676 = vld [vmem:[%s5] sm:$0x1]
        %v677 = vpack.c.bf16 %v670, %v670
        %v679 = vlaneseq
        %v680 = vshrl.u32 %v679, 7
        %v681 = vsub.s32 0, %v680
        %v682 = vrot.slane %v676, %v681
        %v688 = vunpack.c.l.b16 %v672
        %v689 = vunpack.c.l.b16 %v673
        %v690 = vunpack.c.l.b16 %v674
        %v691 = vunpack.c.l.b16 %v675
        %v692 = vpack.c.b16 %v689, %v688
        %v693 = vpack.c.b16 %v691, %v690
        %v697 = vsel %vm642, %v677, 0
        %699 = vmatprep.subr.bf16.mxu0 0
        %700 = vmatpush1.bf16.msra.mxu0 %v692
        %701 = vmatprep.subr.bf16.mxu0 0
        %702 = vmatpush1.bf16.msra.mxu0 %v693
        %703 = vmatprep.subr.bf16.mxu0 0
        %704 = vmatpush1.bf16.msra.mxu0 0
        %705 = vmatprep.subr.bf16.mxu0 0
        %706 = vmatpush1.bf16.msra.mxu0 0
        %707 = vmatprep.subr.bf16.mxu0 0
        %708 = vmatpush1.bf16.msra.mxu0 0
        %709 = vmatprep.subr.bf16.mxu0 0
        %710 = vmatpush1.bf16.msra.mxu0 0
        %711 = vmatprep.subr.bf16.mxu0 0
        %712 = vmatpush1.bf16.msra.mxu0 0
        %713 = vmatprep.subr.bf16.mxu0 0
        %714 = vmatpush1.bf16.msra.mxu0 0
        %715 = vmatprep.subr.bf16.mxu0 0
        %716 = vmatpush1.bf16.msra.mxu0 0
        %717 = vmatprep.subr.bf16.mxu0 0
        %718 = vmatpush1.bf16.msra.mxu0 0
        %719 = vmatprep.subr.bf16.mxu0 0
        %720 = vmatpush1.bf16.msra.mxu0 0
        %721 = vmatprep.subr.bf16.mxu0 0
        %722 = vmatpush1.bf16.msra.mxu0 0
        %723 = vmatprep.subr.bf16.mxu0 0
        %724 = vmatpush1.bf16.msra.mxu0 0
        %725 = vmatprep.subr.bf16.mxu0 0
        %726 = vmatpush1.bf16.msra.mxu0 0
        %727 = vmatprep.subr.bf16.mxu0 0
        %728 = vmatpush1.bf16.msra.mxu0 0
        %729 = vmatprep.subr.bf16.mxu0 0
        %730 = vmatpush1.bf16.msra.mxu0 0
        %731 = vmatprep.mubr.bf16.mxu0 0
        %732 = vmatmul.mubr.bf16.gmra.mrb[0].mxu0 %v697
        %v733 = vpop.f32.mrb[0].mxu0
        %v734 = vadd.f32 %v682, %v733
        %v735 = vpop.f32.mrb[0].mxu0
        %v736 = vpop.f32.mrb[0].mxu0
        %v737 = vpop.f32.mrb[0].mxu0
        %738 = vdwg.mxu0
        %v739 = vpack.c.bf16 %v734, %v734
        %741 = vrot.lane.b32.xlu0 %v739, 96
        %v742 = vpop.permute.xlu0 %741
        %vm743 = vcmask 130048
        %v745 = vsel %vm743, %v739, 0
        %v748 = vsel %vm743, %v742, 0
        %750 = vmatprep.subr.bf16.mxu0 0
        %751 = vmatpush1.bf16.xpose.msra.mxu0 %v748
        %752 = vmatprep.subr.bf16.mxu0 0
        %753 = vmatpush1.bf16.xpose.msra.mxu0 0
        %754 = vmatprep.subr.bf16.mxu0 0
        %755 = vmatpush1.bf16.xpose.msra.mxu0 0
        %756 = vmatprep.subr.bf16.mxu0 0
        %757 = vmatpush1.bf16.xpose.msra.mxu0 0
        %758 = vmatprep.subr.bf16.mxu0 0
        %759 = vmatpush1.bf16.xpose.msra.mxu0 0
        %760 = vmatprep.subr.bf16.mxu0 0
        %761 = vmatpush1.bf16.xpose.msra.mxu0 0
        %762 = vmatprep.subr.bf16.mxu0 0
        %763 = vmatpush1.bf16.xpose.msra.mxu0 0
        %764 = vmatprep.subr.bf16.mxu0 0
        %765 = vmatpush1.bf16.xpose.msra.mxu0 0
        %766 = vmatprep.subr.bf16.mxu0 0
        %767 = vmatpush1.bf16.xpose.msra.mxu0 0
        %768 = vmatprep.subr.bf16.mxu0 0
        %769 = vmatpush1.bf16.xpose.msra.mxu0 0
        %770 = vmatprep.subr.bf16.mxu0 0
        %771 = vmatpush1.bf16.xpose.msra.mxu0 0
        %772 = vmatprep.subr.bf16.mxu0 0
        %773 = vmatpush1.bf16.xpose.msra.mxu0 0
        %774 = vmatprep.subr.bf16.mxu0 0
        %775 = vmatpush1.bf16.xpose.msra.mxu0 0
        %776 = vmatprep.subr.bf16.mxu0 0
        %777 = vmatpush1.bf16.xpose.msra.mxu0 0
        %778 = vmatprep.subr.bf16.mxu0 0
        %779 = vmatpush1.bf16.xpose.msra.mxu0 0
        %780 = vmatprep.subr.bf16.mxu0 0
        %781 = vmatpush1.bf16.xpose.msra.mxu0 0
        %782 = vmatprep.mubr.bf16.mxu0 0
        %783 = vmatmul.mubr.bf16.gmra.mrb[0].mxu0 %v745
        %v784 = vpop.f32.mrb[0].mxu0
        %v785 = vadd.f32 0.0, %v784
        %v786 = vpop.f32.mrb[0].mxu0
        %v787 = vpop.f32.mrb[0].mxu0
        %v788 = vpop.f32.mrb[0].mxu0
        %789 = vdwg.mxu0
        %v790 = vmul.f32 %v785, 0.25
        %v792 = vlaneseq
        %v793 = vshrl.u32 %v792, 7
        %v794 = vsub.s32 0, %v793
        %v795 = vrot.slane %v671, %v794
        %v797 = vadd.f32 %v790, %v795
        %vm798 = vcmask 64512
        %v799 = vsel %vm798, %v797, -inf
        %800 = vmax.xlane.f32.xlu0 %v799
        %v801 = vpop.xlane.xlu0 %800
        %v802 = vsub.f32 %v797, %v801
        %v803 = vmul.f32 %v802, 1.442695
        %v804 = vpow.pop %v803
        %v805 = vsel %vm798, %v804, 0.0
        %806 = vadd.xlane.f32.xlu0 %v805
        %v807 = vpop.xlane.xlu0 %806
        %v808 = vrcp.pop %v807
        %v809 = vmul.f32 %v804, %v808
        %v810 = vpack.c.bf16 %v809, %v809
        %811 = vrot.lane.b32.xlu0 %v739, 64
        %v812 = vpop.permute.xlu0 %811
        %v814 = vsel %vm798, %v810, 0
        %vm816 = vcmask 1043456
        %v818 = vsel %vm816, %v812, 0
        %820 = vmatprep.subr.bf16.mxu0 0
        %821 = vmatpush1.bf16.msra.mxu0 %v818
        %822 = vmatprep.subr.bf16.mxu0 0
        %823 = vmatpush1.bf16.msra.mxu0 0
        %824 = vmatprep.subr.bf16.mxu0 0
        %825 = vmatpush1.bf16.msra.mxu0 0
        %826 = vmatprep.subr.bf16.mxu0 0
        %827 = vmatpush1.bf16.msra.mxu0 0
        %828 = vmatprep.subr.bf16.mxu0 0
        %829 = vmatpush1.bf16.msra.mxu0 0
        %830 = vmatprep.subr.bf16.mxu0 0
        %831 = vmatpush1.bf16.msra.mxu0 0
        %832 = vmatprep.subr.bf16.mxu0 0
        %833 = vmatpush1.bf16.msra.mxu0 0
        %834 = vmatprep.subr.bf16.mxu0 0
        %835 = vmatpush1.bf16.msra.mxu0 0
        %836 = vmatprep.subr.bf16.mxu0 0
        %837 = vmatpush1.bf16.msra.mxu0 0
        %838 = vmatprep.subr.bf16.mxu0 0
        %839 = vmatpush1.bf16.msra.mxu0 0
        %840 = vmatprep.subr.bf16.mxu0 0
        %841 = vmatpush1.bf16.msra.mxu0 0
        %842 = vmatprep.subr.bf16.mxu0 0
        %843 = vmatpush1.bf16.msra.mxu0 0
        %844 = vmatprep.subr.bf16.mxu0 0
        %845 = vmatpush1.bf16.msra.mxu0 0
        %846 = vmatprep.subr.bf16.mxu0 0
        %847 = vmatpush1.bf16.msra.mxu0 0
        %848 = vmatprep.subr.bf16.mxu0 0
        %849 = vmatpush1.bf16.msra.mxu0 0
        %850 = vmatprep.subr.bf16.mxu0 0
        %851 = vmatpush1.bf16.msra.mxu0 0
        %852 = vmatprep.mubr.bf16.mxu0 0
        %853 = vmatmul.mubr.bf16.gmra.mrb[0].mxu0 %v814
        %v854 = vpop.f32.mrb[0].mxu0
        %v855 = vadd.f32 0.0, %v854
        %v856 = vpop.f32.mrb[0].mxu0
        %v857 = vpop.f32.mrb[0].mxu0
        %v858 = vpop.f32.mrb[0].mxu0
        %859 = vdwg.mxu0
        %860 = vrot.lane.b32.xlu0 %v739, 112
        %v861 = vpop.permute.xlu0 %860
        %862 = vrot.lane.b32.xlu0 %v739, 80
        %v863 = vpop.permute.xlu0 %862
        %v865 = vsel %vm743, %v861, 0
        %v868 = vsel %vm743, %v863, 0
        %870 = vmatprep.subr.bf16.mxu0 0
        %871 = vmatpush1.bf16.xpose.msra.mxu0 %v868
        %872 = vmatprep.subr.bf16.mxu0 0
        %873 = vmatpush1.bf16.xpose.msra.mxu0 0
        %874 = vmatprep.subr.bf16.mxu0 0
        %875 = vmatpush1.bf16.xpose.msra.mxu0 0
        %876 = vmatprep.subr.bf16.mxu0 0
        %877 = vmatpush1.bf16.xpose.msra.mxu0 0
        %878 = vmatprep.subr.bf16.mxu0 0
        %879 = vmatpush1.bf16.xpose.msra.mxu0 0
        %880 = vmatprep.subr.bf16.mxu0 0
        %881 = vmatpush1.bf16.xpose.msra.mxu0 0
        %882 = vmatprep.subr.bf16.mxu0 0
        %883 = vmatpush1.bf16.xpose.msra.mxu0 0
        %884 = vmatprep.subr.bf16.mxu0 0
        %885 = vmatpush1.bf16.xpose.msra.mxu0 0
        %886 = vmatprep.subr.bf16.mxu0 0
        %887 = vmatpush1.bf16.xpose.msra.mxu0 0
        %888 = vmatprep.subr.bf16.mxu0 0
        %889 = vmatpush1.bf16.xpose.msra.mxu0 0
        %890 = vmatprep.subr.bf16.mxu0 0
        %891 = vmatpush1.bf16.xpose.msra.mxu0 0
        %892 = vmatprep.subr.bf16.mxu0 0
        %893 = vmatpush1.bf16.xpose.msra.mxu0 0
        %894 = vmatprep.subr.bf16.mxu0 0
        %895 = vmatpush1.bf16.xpose.msra.mxu0 0
        %896 = vmatprep.subr.bf16.mxu0 0
        %897 = vmatpush1.bf16.xpose.msra.mxu0 0
        %898 = vmatprep.subr.bf16.mxu0 0
        %899 = vmatpush1.bf16.xpose.msra.mxu0 0
        %900 = vmatprep.subr.bf16.mxu0 0
        %901 = vmatpush1.bf16.xpose.msra.mxu0 0
        %902 = vmatprep.mubr.bf16.mxu0 0
        %903 = vmatmul.mubr.bf16.gmra.mrb[0].mxu0 %v865
        %v904 = vpop.f32.mrb[0].mxu0
        %v905 = vadd.f32 0.0, %v904
        %v906 = vpop.f32.mrb[0].mxu0
        %v907 = vpop.f32.mrb[0].mxu0
        %v908 = vpop.f32.mrb[0].mxu0
        %909 = vdwg.mxu0
        %v910 = vmul.f32 %v905, 0.25
        %v911 = vadd.f32 %v910, %v795
        %v912 = vsel %vm798, %v911, -inf
        %913 = vmax.xlane.f32.xlu0 %v912
        %v914 = vpop.xlane.xlu0 %913
        %v915 = vsub.f32 %v911, %v914
        %v916 = vmul.f32 %v915, 1.442695
        %v917 = vpow.pop %v916
        %v918 = vsel %vm798, %v917, 0.0
        %919 = vadd.xlane.f32.xlu0 %v918
        %v920 = vpop.xlane.xlu0 %919
        %v921 = vrcp.pop %v920
        %v922 = vmul.f32 %v917, %v921
        %v923 = vpack.c.bf16 %v922, %v922
        %924 = vrot.lane.b32.xlu0 %v739, 48
        %v925 = vpop.permute.xlu0 %924
        %v927 = vsel %vm798, %v923, 0
        %v930 = vsel %vm816, %v925, 0
        %932 = vmatprep.subr.bf16.mxu0 0
        %933 = vmatpush1.bf16.msra.mxu0 %v930
        %934 = vmatprep.subr.bf16.mxu0 0
        %935 = vmatpush1.bf16.msra.mxu0 0
        %936 = vmatprep.subr.bf16.mxu0 0
        %937 = vmatpush1.bf16.msra.mxu0 0
        %938 = vmatprep.subr.bf16.mxu0 0
        %939 = vmatpush1.bf16.msra.mxu0 0
        %940 = vmatprep.subr.bf16.mxu0 0
        %941 = vmatpush1.bf16.msra.mxu0 0
        %942 = vmatprep.subr.bf16.mxu0 0
        %943 = vmatpush1.bf16.msra.mxu0 0
        %944 = vmatprep.subr.bf16.mxu0 0
        %945 = vmatpush1.bf16.msra.mxu0 0
        %946 = vmatprep.subr.bf16.mxu0 0
        %947 = vmatpush1.bf16.msra.mxu0 0
        %948 = vmatprep.subr.bf16.mxu0 0
        %949 = vmatpush1.bf16.msra.mxu0 0
        %950 = vmatprep.subr.bf16.mxu0 0
        %951 = vmatpush1.bf16.msra.mxu0 0
        %952 = vmatprep.subr.bf16.mxu0 0
        %953 = vmatpush1.bf16.msra.mxu0 0
        %954 = vmatprep.subr.bf16.mxu0 0
        %955 = vmatpush1.bf16.msra.mxu0 0
        %956 = vmatprep.subr.bf16.mxu0 0
        %957 = vmatpush1.bf16.msra.mxu0 0
        %958 = vmatprep.subr.bf16.mxu0 0
        %959 = vmatpush1.bf16.msra.mxu0 0
        %960 = vmatprep.subr.bf16.mxu0 0
        %961 = vmatpush1.bf16.msra.mxu0 0
        %962 = vmatprep.subr.bf16.mxu0 0
        %963 = vmatpush1.bf16.msra.mxu0 0
        %964 = vmatprep.mubr.bf16.mxu0 0
        %965 = vmatmul.mubr.bf16.gmra.mrb[0].mxu0 %v927
        %v966 = vpop.f32.mrb[0].mxu0
        %v967 = vadd.f32 0.0, %v966
        %v968 = vpop.f32.mrb[0].mxu0
        %v969 = vpop.f32.mrb[0].mxu0
        %v970 = vpop.f32.mrb[0].mxu0
        %971 = vdwg.mxu0
        %973 = vrot.lane.b32.xlu0 %v967, 16
        %v974 = vpop.permute.xlu0 %973
        %v976 = vsel %vm743, %v855, %v974
        %v977 = vld [vmem:[%s6] sm:$0xf]
        %v978 = vld [vmem:[%s6 + $0x4] sm:$0xf]
        %v979 = vld [vmem:[%s6 + $0x8] sm:$0xf]
        %v980 = vld [vmem:[%s6 + $0xc] sm:$0xf]
        %v981 = vld [vmem:[%s7] sm:$0x1]
        %v982 = vpack.c.bf16 %v976, %v976
        %v984 = vlaneseq
        %v985 = vshrl.u32 %v984, 7
        %v986 = vsub.s32 0, %v985
        %v987 = vrot.slane %v981, %v986
        %v993 = vunpack.c.l.b16 %v977
        %v994 = vunpack.c.l.b16 %v978
        %v995 = vunpack.c.l.b16 %v979
        %v996 = vunpack.c.l.b16 %v980
        %v997 = vpack.c.b16 %v994, %v993
        %v998 = vpack.c.b16 %v996, %v995
        %v1002 = vsel %vm642, %v982, 0
        %1004 = vmatprep.subr.bf16.mxu0 0
        %1005 = vmatpush1.bf16.msra.mxu0 %v997
        %1006 = vmatprep.subr.bf16.mxu0 0
        %1007 = vmatpush1.bf16.msra.mxu0 %v998
        %1008 = vmatprep.subr.bf16.mxu0 0
        %1009 = vmatpush1.bf16.msra.mxu0 0
        %1010 = vmatprep.subr.bf16.mxu0 0
        %1011 = vmatpush1.bf16.msra.mxu0 0
        %1012 = vmatprep.subr.bf16.mxu0 0
        %1013 = vmatpush1.bf16.msra.mxu0 0
        %1014 = vmatprep.subr.bf16.mxu0 0
        %1015 = vmatpush1.bf16.msra.mxu0 0
        %1016 = vmatprep.subr.bf16.mxu0 0
        %1017 = vmatpush1.bf16.msra.mxu0 0
        %1018 = vmatprep.subr.bf16.mxu0 0
        %1019 = vmatpush1.bf16.msra.mxu0 0
        %1020 = vmatprep.subr.bf16.mxu0 0
        %1021 = vmatpush1.bf16.msra.mxu0 0
        %1022 = vmatprep.subr.bf16.mxu0 0
        %1023 = vmatpush1.bf16.msra.mxu0 0
        %1024 = vmatprep.subr.bf16.mxu0 0
        %1025 = vmatpush1.bf16.msra.mxu0 0
        %1026 = vmatprep.subr.bf16.mxu0 0
        %1027 = vmatpush1.bf16.msra.mxu0 0
        %1028 = vmatprep.subr.bf16.mxu0 0
        %1029 = vmatpush1.bf16.msra.mxu0 0
        %1030 = vmatprep.subr.bf16.mxu0 0
        %1031 = vmatpush1.bf16.msra.mxu0 0
        %1032 = vmatprep.subr.bf16.mxu0 0
        %1033 = vmatpush1.bf16.msra.mxu0 0
        %1034 = vmatprep.subr.bf16.mxu0 0
        %1035 = vmatpush1.bf16.msra.mxu0 0
        %1036 = vmatprep.mubr.bf16.mxu0 0
        %1037 = vmatmul.mubr.bf16.gmra.mrb[0].mxu0 %v1002
        %v1038 = vpop.f32.mrb[0].mxu0
        %v1039 = vadd.f32 %v987, %v1038
        %v1040 = vpop.f32.mrb[0].mxu0
        %v1041 = vpop.f32.mrb[0].mxu0
        %v1042 = vpop.f32.mrb[0].mxu0
        %1043 = vdwg.mxu0
        %v1044 = vadd.f32 %v670, %v1039
        %v1045 = vld [vmem:[%s8] sm:$0x1]
        %v1046 = vld [vmem:[%s9] sm:$0x1]
        %v1047 = vsel %vm642, %v1044, 0.0
        %1048 = vadd.xlane.f32.xlu0 %v1047
        %v1049 = vpop.xlane.xlu0 %1048
        %v1050 = vmul.f32 %v1049, %v646
        %v1051 = vsub.f32 %v1044, %v1050
        %v1052 = vmul.f32 %v1051, %v1051
        %v1053 = vsel %vm642, %v1052, 0.0
        %1054 = vadd.xlane.f32.xlu0 %v1053
        %v1055 = vpop.xlane.xlu0 %1054
        %v1056 = vmul.f32 %v1055, %v646
        %v1057 = vadd.f32 %v1056, 1e-12
        %v1058 = vrsqrt.pop %v1057
        %v1059 = vmul.f32 %v1051, %v1058
        %v1061 = vlaneseq
        %v1062 = vshrl.u32 %v1061, 7
        %v1063 = vsub.s32 0, %v1062
        %v1064 = vrot.slane %v1045, %v1063
        %v1066 = vmul.f32 %v1059, %v1064
        %v1068 = vlaneseq
        %v1069 = vshrl.u32 %v1068, 7
        %v1070 = vsub.s32 0, %v1069
        %v1071 = vrot.slane %v1046, %v1070
        %v1073 = vadd.f32 %v1066, %v1071
        %v1074 = vld [vmem:[%s10] sm:$0xf]
        %v1075 = vld [vmem:[%s10 + $0x4] sm:$0xf]
        %v1076 = vld [vmem:[%s10 + $0x8] sm:$0xf]
        %v1077 = vld [vmem:[%s10 + $0xc] sm:$0xf]
        %v1078 = vld [vmem:[%s11] sm:$0x1]
        %v1079 = vpack.c.bf16 %v1073, %v1073
        %v1081 = vlaneseq
        %v1082 = vshrl.u32 %v1081, 7
        %v1083 = vsub.s32 0, %v1082
        %v1084 = vrot.slane %v1078, %v1083
        %v1090 = vunpack.c.l.b16 %v1074
        %v1091 = vunpack.c.l.b16 %v1075
        %v1092 = vunpack.c.l.b16 %v1076
        %v1093 = vunpack.c.l.b16 %v1077
        %v1094 = vpack.c.b16 %v1091, %v1090
        %v1095 = vpack.c.b16 %v1093, %v1092
        %v1099 = vsel %vm642, %v1079, 0
        %1101 = vmatprep.subr.bf16.mxu0 0
        %1102 = vmatpush1.bf16.msra.mxu0 %v1094
        %1103 = vmatprep.subr.bf16.mxu0 0
        %1104 = vmatpush1.bf16.msra.mxu0 %v1095
        %1105 = vmatprep.subr.bf16.mxu0 0
        %1106 = vmatpush1.bf16.msra.mxu0 0
        %1107 = vmatprep.subr.bf16.mxu0 0
        %1108 = vmatpush1.bf16.msra.mxu0 0
        %1109 = vmatprep.subr.bf16.mxu0 0
        %1110 = vmatpush1.bf16.msra.mxu0 0
        %1111 = vmatprep.subr.bf16.mxu0 0
        %1112 = vmatpush1.bf16.msra.mxu0 0
        %1113 = vmatprep.subr.bf16.mxu0 0
        %1114 = vmatpush1.bf16.msra.mxu0 0
        %1115 = vmatprep.subr.bf16.mxu0 0
        %1116 = vmatpush1.bf16.msra.mxu0 0
        %1117 = vmatprep.subr.bf16.mxu0 0
        %1118 = vmatpush1.bf16.msra.mxu0 0
        %1119 = vmatprep.subr.bf16.mxu0 0
        %1120 = vmatpush1.bf16.msra.mxu0 0
        %1121 = vmatprep.subr.bf16.mxu0 0
        %1122 = vmatpush1.bf16.msra.mxu0 0
        %1123 = vmatprep.subr.bf16.mxu0 0
        %1124 = vmatpush1.bf16.msra.mxu0 0
        %1125 = vmatprep.subr.bf16.mxu0 0
        %1126 = vmatpush1.bf16.msra.mxu0 0
        %1127 = vmatprep.subr.bf16.mxu0 0
        %1128 = vmatpush1.bf16.msra.mxu0 0
        %1129 = vmatprep.subr.bf16.mxu0 0
        %1130 = vmatpush1.bf16.msra.mxu0 0
        %1131 = vmatprep.subr.bf16.mxu0 0
        %1132 = vmatpush1.bf16.msra.mxu0 0
        %1133 = vmatprep.mubr.bf16.mxu0 0
        %1134 = vmatmul.mubr.bf16.gmra.mrb[0].mxu0 %v1099
        %v1135 = vpop.f32.mrb[0].mxu0
        %v1136 = vadd.f32 %v1084, %v1135
        %v1137 = vpop.f32.mrb[0].mxu0
        %v1138 = vpop.f32.mrb[0].mxu0
        %v1139 = vpop.f32.mrb[0].mxu0
        %1140 = vdwg.mxu0
        %v1141 = vmul.f32 %v1136, %v1136
        %v1142 = vmul.f32 %v1136, %v1141
        %v1143 = vmul.f32 %v1142, 0.044715
        %v1144 = vadd.f32 %v1136, %v1143
        %v1145 = vmul.f32 %v1144, 0.7978846
        %v1146 = vtanh.pop %v1145
        %v1147 = vadd.f32 %v1146, 1.0
        %v1148 = vmul.f32 %v1147, 0.5
        %v1149 = vmul.f32 %v1136, %v1148
        %v1150 = vld [vmem:[%s12] sm:$0xf]
        %v1151 = vld [vmem:[%s12 + $0x4] sm:$0xf]
        %v1152 = vld [vmem:[%s12 + $0x8] sm:$0xf]
        %v1153 = vld [vmem:[%s12 + $0xc] sm:$0xf]
        %v1154 = vld [vmem:[%s12 + $0x10] sm:$0xf]
        %v1155 = vld [vmem:[%s12 + $0x14] sm:$0xf]
        %v1156 = vld [vmem:[%s12 + $0x18] sm:$0xf]
        %v1157 = vld [vmem:[%s12 + $0x1c] sm:$0xf]
        %v1158 = vld [vmem:[%s13] sm:$0x1]
        %v1159 = vpack.c.bf16 %v1149, %v1149
        %v1161 = vlaneseq
        %v1162 = vshrl.u32 %v1161, 7
        %v1163 = vsub.s32 0, %v1162
        %v1164 = vrot.slane %v1158, %v1163
        %v1174 = vunpack.c.l.b16 %v1150
        %v1175 = vunpack.c.l.b16 %v1151
        %v1176 = vunpack.c.l.b16 %v1152
        %v1177 = vunpack.c.l.b16 %v1153
        %v1178 = vunpack.c.l.b16 %v1154
        %v1179 = vunpack.c.l.b16 %v1155
        %v1180 = vunpack.c.l.b16 %v1156
        %v1181 = vunpack.c.l.b16 %v1157
        %v1182 = vpack.c.b16 %v1175, %v1174
        %v1183 = vpack.c.b16 %v1177, %v1176
        %v1184 = vpack.c.b16 %v1179, %v1178
        %v1185 = vpack.c.b16 %v1181, %v1180
        %vm1190 = vcmask 523264
        %v1192 = vsel %vm1190, %v1159, 0
        %1194 = vmatprep.subr.bf16.mxu0 0
        %1195 = vmatpush1.bf16.msra.mxu0 %v1182
        %1196 = vmatprep.subr.bf16.mxu0 0
        %1197 = vmatpush1.bf16.msra.mxu0 %v1183
        %1198 = vmatprep.subr.bf16.mxu0 0
        %1199 = vmatpush1.bf16.msra.mxu0 %v1184
        %1200 = vmatprep.subr.bf16.mxu0 0
        %1201 = vmatpush1.bf16.msra.mxu0 %v1185
        %1202 = vmatprep.subr.bf16.mxu0 0
        %1203 = vmatpush1.bf16.msra.mxu0 0
        %1204 = vmatprep.subr.bf16.mxu0 0
        %1205 = vmatpush1.bf16.msra.mxu0 0
        %1206 = vmatprep.subr.bf16.mxu0 0
        %1207 = vmatpush1.bf16.msra.mxu0 0
        %1208 = vmatprep.subr.bf16.mxu0 0
        %1209 = vmatpush1.bf16.msra.mxu0 0
        %1210 = vmatprep.subr.bf16.mxu0 0
        %1211 = vmatpush1.bf16.msra.mxu0 0
        %1212 = vmatprep.subr.bf16.mxu0 0
        %1213 = vmatpush1.bf16.msra.mxu0 0
        %1214 = vmatprep.subr.bf16.mxu0 0
        %1215 = vmatpush1.bf16.msra.mxu0 0
        %1216 = vmatprep.subr.bf16.mxu0 0
        %1217 = vmatpush1.bf16.msra.mxu0 0
        %1218 = vmatprep.subr.bf16.mxu0 0
        %1219 = vmatpush1.bf16.msra.mxu0 0
        %1220 = vmatprep.subr.bf16.mxu0 0
        %1221 = vmatpush1.bf16.msra.mxu0 0
        %1222 = vmatprep.subr.bf16.mxu0 0
        %1223 = vmatpush1.bf16.msra.mxu0 0
        %1224 = vmatprep.subr.bf16.mxu0 0
        %1225 = vmatpush1.bf16.msra.mxu0 0
        %1226 = vmatprep.mubr.bf16.mxu0 0
        %1227 = vmatmul.mubr.bf16.gmra.mrb[0].mxu0 %v1192
        %v1228 = vpop.f32.mrb[0].mxu0
        %v1229 = vadd.f32 %v1164, %v1228
        %v1230 = vpop.f32.mrb[0].mxu0
        %v1231 = vpop.f32.mrb[0].mxu0
        %v1232 = vpop.f32.mrb[0].mxu0
        %1233 = vdwg.mxu0
        %v1234 = vadd.f32 %v1073, %v1229
        %v1235 = vld [vmem:[%s14] sm:$0x1]
        %v1236 = vld [vmem:[%s15] sm:$0x1]
        %v1237 = vsel %vm642, %v1234, 0.0
        %1238 = vadd.xlane.f32.xlu0 %v1237
        %v1239 = vpop.xlane.xlu0 %1238
        %v1240 = vmul.f32 %v1239, %v646
        %v1241 = vsub.f32 %v1234, %v1240
        %v1242 = vmul.f32 %v1241, %v1241
        %v1243 = vsel %vm642, %v1242, 0.0
        %1244 = vadd.xlane.f32.xlu0 %v1243
        %v1245 = vpop.xlane.xlu0 %1244
        %v1246 = vmul.f32 %v1245, %v646
        %v1247 = vadd.f32 %v1246, 1e-12
        %v1248 = vrsqrt.pop %v1247
        %v1249 = vmul.f32 %v1241, %v1248
        %v1251 = vlaneseq
        %v1252 = vshrl.u32 %v1251, 7
        %v1253 = vsub.s32 0, %v1252
        %v1254 = vrot.slane %v1235, %v1253
        %v1256 = vmul.f32 %v1249, %v1254
        %v1258 = vlaneseq
        %v1259 = vshrl.u32 %v1258, 7
        %v1260 = vsub.s32 0, %v1259
        %v1261 = vrot.slane %v1236, %v1260
        %v1263 = vadd.f32 %v1256, %v1261
        %s1264 = scalar_lea.vmem %s4, 16
        %v1265 = vld [vmem:[%s1264] sm:$0xf]
        %v1266 = vld [vmem:[%s1264 + $0x4] sm:$0xf]
        %v1267 = vld [vmem:[%s1264 + $0x8] sm:$0xf]
        %v1268 = vld [vmem:[%s1264 + $0xc] sm:$0xf]
        %s1269 = scalar_lea.vmem %s5, 1
        %v1270 = vld [vmem:[%s1269] sm:$0x1]
        %v1271 = vpack.c.bf16 %v1263, %v1263
        %v1273 = vlaneseq
        %v1274 = vshrl.u32 %v1273, 7
        %v1275 = vsub.s32 0, %v1274
        %v1276 = vrot.slane %v1270, %v1275
        %v1282 = vunpack.c.l.b16 %v1265
        %v1283 = vunpack.c.l.b16 %v1266
        %v1284 = vunpack.c.l.b16 %v1267
        %v1285 = vunpack.c.l.b16 %v1268
        %v1286 = vpack.c.b16 %v1283, %v1282
        %v1287 = vpack.c.b16 %v1285, %v1284
        %v1291 = vsel %vm642, %v1271, 0
        %1293 = vmatprep.subr.bf16.mxu0 0
        %1294 = vmatpush1.bf16.msra.mxu0 %v1286
        %1295 = vmatprep.subr.bf16.mxu0 0
        %1296 = vmatpush1.bf16.msra.mxu0 %v1287
        %1297 = vmatprep.subr.bf16.mxu0 0
        %1298 = vmatpush1.bf16.msra.mxu0 0
        %1299 = vmatprep.subr.bf16.mxu0 0
        %1300 = vmatpush1.bf16.msra.mxu0 0
        %1301 = vmatprep.subr.bf16.mxu0 0
        %1302 = vmatpush1.bf16.msra.mxu0 0
        %1303 = vmatprep.subr.bf16.mxu0 0
        %1304 = vmatpush1.bf16.msra.mxu0 0
        %1305 = vmatprep.subr.bf16.mxu0 0
        %1306 = vmatpush1.bf16.msra.mxu0 0
        %1307 = vmatprep.subr.bf16.mxu0 0
        %1308 = vmatpush1.bf16.msra.mxu0 0
        %1309 = vmatprep.subr.bf16.mxu0 0
        %1310 = vmatpush1.bf16.msra.mxu0 0
        %1311 = vmatprep.subr.bf16.mxu0 0
        %1312 = vmatpush1.bf16.msra.mxu0 0
        %1313 = vmatprep.subr.bf16.mxu0 0
        %1314 = vmatpush1.bf16.msra.mxu0 0
        %1315 = vmatprep.subr.bf16.mxu0 0
        %1316 = vmatpush1.bf16.msra.mxu0 0
        %1317 = vmatprep.subr.bf16.mxu0 0
        %1318 = vmatpush1.bf16.msra.mxu0 0
        %1319 = vmatprep.subr.bf16.mxu0 0
        %1320 = vmatpush1.bf16.msra.mxu0 0
        %1321 = vmatprep.subr.bf16.mxu0 0
        %1322 = vmatpush1.bf16.msra.mxu0 0
        %1323 = vmatprep.subr.bf16.mxu0 0
        %1324 = vmatpush1.bf16.msra.mxu0 0
        %1325 = vmatprep.mubr.bf16.mxu0 0
        %1326 = vmatmul.mubr.bf16.gmra.mrb[0].mxu0 %v1291
        %v1327 = vpop.f32.mrb[0].mxu0
        %v1328 = vadd.f32 %v1276, %v1327
        %v1329 = vpop.f32.mrb[0].mxu0
        %v1330 = vpop.f32.mrb[0].mxu0
        %v1331 = vpop.f32.mrb[0].mxu0
        %1332 = vdwg.mxu0
        %v1333 = vpack.c.bf16 %v1328, %v1328
        %1335 = vrot.lane.b32.xlu0 %v1333, 96
        %v1336 = vpop.permute.xlu0 %1335
        %v1338 = vsel %vm743, %v1333, 0
        %v1341 = vsel %vm743, %v1336, 0
        %1343 = vmatprep.subr.bf16.mxu0 0
        %1344 = vmatpush1.bf16.xpose.msra.mxu0 %v1341
        %1345 = vmatprep.subr.bf16.mxu0 0
        %1346 = vmatpush1.bf16.xpose.msra.mxu0 0
        %1347 = vmatprep.subr.bf16.mxu0 0
        %1348 = vmatpush1.bf16.xpose.msra.mxu0 0
        %1349 = vmatprep.subr.bf16.mxu0 0
        %1350 = vmatpush1.bf16.xpose.msra.mxu0 0
        %1351 = vmatprep.subr.bf16.mxu0 0
        %1352 = vmatpush1.bf16.xpose.msra.mxu0 0
        %1353 = vmatprep.subr.bf16.mxu0 0
        %1354 = vmatpush1.bf16.xpose.msra.mxu0 0
        %1355 = vmatprep.subr.bf16.mxu0 0
        %1356 = vmatpush1.bf16.xpose.msra.mxu0 0
        %1357 = vmatprep.subr.bf16.mxu0 0
        %1358 = vmatpush1.bf16.xpose.msra.mxu0 0
        %1359 = vmatprep.subr.bf16.mxu0 0
        %1360 = vmatpush1.bf16.xpose.msra.mxu0 0
        %1361 = vmatprep.subr.bf16.mxu0 0
        %1362 = vmatpush1.bf16.xpose.msra.mxu0 0
        %1363 = vmatprep.subr.bf16.mxu0 0
        %1364 = vmatpush1.bf16.xpose.msra.mxu0 0
        %1365 = vmatprep.subr.bf16.mxu0 0
        %1366 = vmatpush1.bf16.xpose.msra.mxu0 0
        %1367 = vmatprep.subr.bf16.mxu0 0
        %1368 = vmatpush1.bf16.xpose.msra.mxu0 0
        %1369 = vmatprep.subr.bf16.mxu0 0
        %1370 = vmatpush1.bf16.xpose.msra.mxu0 0
        %1371 = vmatprep.subr.bf16.mxu0 0
        %1372 = vmatpush1.bf16.xpose.msra.mxu0 0
        %1373 = vmatprep.subr.bf16.mxu0 0
        %1374 = vmatpush1.bf16.xpose.msra.mxu0 0
        %1375 = vmatprep.mubr.bf16.mxu0 0
        %1376 = vmatmul.mubr.bf16.gmra.mrb[0].mxu0 %v1338
        %v1377 = vpop.f32.mrb[0].mxu0
        %v1378 = vadd.f32 0.0, %v1377
        %v1379 = vpop.f32.mrb[0].mxu0
        %v1380 = vpop.f32.mrb[0].mxu0
        %v1381 = vpop.f32.mrb[0].mxu0
        %1382 = vdwg.mxu0
        %v1383 = vmul.f32 %v1378, 0.25
        %v1384 = vadd.f32 %v1383, %v795
        %v1385 = vsel %vm798, %v1384, -inf
        %1386 = vmax.xlane.f32.xlu0 %v1385
        %v1387 = vpop.xlane.xlu0 %1386
        %v1388 = vsub.f32 %v1384, %v1387
        %v1389 = vmul.f32 %v1388, 1.442695
        %v1390 = vpow.pop %v1389
        %v1391 = vsel %vm798, %v1390, 0.0
        %1392 = vadd.xlane.f32.xlu0 %v1391
        %v1393 = vpop.xlane.xlu0 %1392
        %v1394 = vrcp.pop %v1393
        %v1395 = vmul.f32 %v1390, %v1394
        %v1396 = vpack.c.bf16 %v1395, %v1395
        %1397 = vrot.lane.b32.xlu0 %v1333, 64
        %v1398 = vpop.permute.xlu0 %1397
        %v1400 = vsel %vm798, %v1396, 0
        %v1403 = vsel %vm816, %v1398, 0
        %1405 = vmatprep.subr.bf16.mxu0 0
        %1406 = vmatpush1.bf16.msra.mxu0 %v1403
        %1407 = vmatprep.subr.bf16.mxu0 0
        %1408 = vmatpush1.bf16.msra.mxu0 0
        %1409 = vmatprep.subr.bf16.mxu0 0
        %1410 = vmatpush1.bf16.msra.mxu0 0
        %1411 = vmatprep.subr.bf16.mxu0 0
        %1412 = vmatpush1.bf16.msra.mxu0 0
        %1413 = vmatprep.subr.bf16.mxu0 0
        %1414 = vmatpush1.bf16.msra.mxu0 0
        %1415 = vmatprep.subr.bf16.mxu0 0
        %1416 = vmatpush1.bf16.msra.mxu0 0
        %1417 = vmatprep.subr.bf16.mxu0 0
        %1418 = vmatpush1.bf16.msra.mxu0 0
        %1419 = vmatprep.subr.bf16.mxu0 0
        %1420 = vmatpush1.bf16.msra.mxu0 0
        %1421 = vmatprep.subr.bf16.mxu0 0
        %1422 = vmatpush1.bf16.msra.mxu0 0
        %1423 = vmatprep.subr.bf16.mxu0 0
        %1424 = vmatpush1.bf16.msra.mxu0 0
        %1425 = vmatprep.subr.bf16.mxu0 0
        %1426 = vmatpush1.bf16.msra.mxu0 0
        %1427 = vmatprep.subr.bf16.mxu0 0
        %1428 = vmatpush1.bf16.msra.mxu0 0
        %1429 = vmatprep.subr.bf16.mxu0 0
        %1430 = vmatpush1.bf16.msra.mxu0 0
        %1431 = vmatprep.subr.bf16.mxu0 0
        %1432 = vmatpush1.bf16.msra.mxu0 0
        %1433 = vmatprep.subr.bf16.mxu0 0
        %1434 = vmatpush1.bf16.msra.mxu0 0
        %1435 = vmatprep.subr.bf16.mxu0 0
        %1436 = vmatpush1.bf16.msra.mxu0 0
        %1437 = vmatprep.mubr.bf16.mxu0 0
        %1438 = vmatmul.mubr.bf16.gmra.mrb[0].mxu0 %v1400
        %v1439 = vpop.f32.mrb[0].mxu0
        %v1440 = vadd.f32 0.0, %v1439
        %v1441 = vpop.f32.mrb[0].mxu0
        %v1442 = vpop.f32.mrb[0].mxu0
        %v1443 = vpop.f32.mrb[0].mxu0
        %1444 = vdwg.mxu0
        %1445 = vrot.lane.b32.xlu0 %v1333, 112
        %v1446 = vpop.permute.xlu0 %1445
        %1447 = vrot.lane.b32.xlu0 %v1333, 80
        %v1448 = vpop.permute.xlu0 %1447
        %v1450 = vsel %vm743, %v1446, 0
        %v1453 = vsel %vm743, %v1448, 0
        %1455 = vmatprep.subr.bf16.mxu0 0
        %1456 = vmatpush1.bf16.xpose.msra.mxu0 %v1453
        %1457 = vmatprep.subr.bf16.mxu0 0
        %1458 = vmatpush1.bf16.xpose.msra.mxu0 0
        %1459 = vmatprep.subr.bf16.mxu0 0
        %1460 = vmatpush1.bf16.xpose.msra.mxu0 0
        %1461 = vmatprep.subr.bf16.mxu0 0
        %1462 = vmatpush1.bf16.xpose.msra.mxu0 0
        %1463 = vmatprep.subr.bf16.mxu0 0
        %1464 = vmatpush1.bf16.xpose.msra.mxu0 0
        %1465 = vmatprep.subr.bf16.mxu0 0
        %1466 = vmatpush1.bf16.xpose.msra.mxu0 0
        %1467 = vmatprep.subr.bf16.mxu0 0
        %1468 = vmatpush1.bf16.xpose.msra.mxu0 0
        %1469 = vmatprep.subr.bf16.mxu0 0
        %1470 = vmatpush1.bf16.xpose.msra.mxu0 0
        %1471 = vmatprep.subr.bf16.mxu0 0
        %1472 = vmatpush1.bf16.xpose.msra.mxu0 0
        %1473 = vmatprep.subr.bf16.mxu0 0
        %1474 = vmatpush1.bf16.xpose.msra.mxu0 0
        %1475 = vmatprep.subr.bf16.mxu0 0
        %1476 = vmatpush1.bf16.xpose.msra.mxu0 0
        %1477 = vmatprep.subr.bf16.mxu0 0
        %1478 = vmatpush1.bf16.xpose.msra.mxu0 0
        %1479 = vmatprep.subr.bf16.mxu0 0
        %1480 = vmatpush1.bf16.xpose.msra.mxu0 0
        %1481 = vmatprep.subr.bf16.mxu0 0
        %1482 = vmatpush1.bf16.xpose.msra.mxu0 0
        %1483 = vmatprep.subr.bf16.mxu0 0
        %1484 = vmatpush1.bf16.xpose.msra.mxu0 0
        %1485 = vmatprep.subr.bf16.mxu0 0
        %1486 = vmatpush1.bf16.xpose.msra.mxu0 0
        %1487 = vmatprep.mubr.bf16.mxu0 0
        %1488 = vmatmul.mubr.bf16.gmra.mrb[0].mxu0 %v1450
        %v1489 = vpop.f32.mrb[0].mxu0
        %v1490 = vadd.f32 0.0, %v1489
        %v1491 = vpop.f32.mrb[0].mxu0
        %v1492 = vpop.f32.mrb[0].mxu0
        %v1493 = vpop.f32.mrb[0].mxu0
        %1494 = vdwg.mxu0
        %v1495 = vmul.f32 %v1490, 0.25
        %v1496 = vadd.f32 %v1495, %v795
        %v1497 = vsel %vm798, %v1496, -inf
        %1498 = vmax.xlane.f32.xlu0 %v1497
        %v1499 = vpop.xlane.xlu0 %1498
        %v1500 = vsub.f32 %v1496, %v1499
        %v1501 = vmul.f32 %v1500, 1.442695
        %v1502 = vpow.pop %v1501
        %v1503 = vsel %vm798, %v1502, 0.0
        %1504 = vadd.xlane.f32.xlu0 %v1503
        %v1505 = vpop.xlane.xlu0 %1504
        %v1506 = vrcp.pop %v1505
        %v1507 = vmul.f32 %v1502, %v1506
        %v1508 = vpack.c.bf16 %v1507, %v1507
        %1509 = vrot.lane.b32.xlu0 %v1333, 48
        %v1510 = vpop.permute.xlu0 %1509
        %v1512 = vsel %vm798, %v1508, 0
        %v1515 = vsel %vm816, %v1510, 0
        %1517 = vmatprep.subr.bf16.mxu0 0
        %1518 = vmatpush1.bf16.msra.mxu0 %v1515
        %1519 = vmatprep.subr.bf16.mxu0 0
        %1520 = vmatpush1.bf16.msra.mxu0 0
        %1521 = vmatprep.subr.bf16.mxu0 0
        %1522 = vmatpush1.bf16.msra.mxu0 0
        %1523 = vmatprep.subr.bf16.mxu0 0
        %1524 = vmatpush1.bf16.msra.mxu0 0
        %1525 = vmatprep.subr.bf16.mxu0 0
        %1526 = vmatpush1.bf16.msra.mxu0 0
        %1527 = vmatprep.subr.bf16.mxu0 0
        %1528 = vmatpush1.bf16.msra.mxu0 0
        %1529 = vmatprep.subr.bf16.mxu0 0
        %1530 = vmatpush1.bf16.msra.mxu0 0
        %1531 = vmatprep.subr.bf16.mxu0 0
        %1532 = vmatpush1.bf16.msra.mxu0 0
        %1533 = vmatprep.subr.bf16.mxu0 0
        %1534 = vmatpush1.bf16.msra.mxu0 0
        %1535 = vmatprep.subr.bf16.mxu0 0
        %1536 = vmatpush1.bf16.msra.mxu0 0
        %1537 = vmatprep.subr.bf16.mxu0 0
        %1538 = vmatpush1.bf16.msra.mxu0 0
        %1539 = vmatprep.subr.bf16.mxu0 0
        %1540 = vmatpush1.bf16.msra.mxu0 0
        %1541 = vmatprep.subr.bf16.mxu0 0
        %1542 = vmatpush1.bf16.msra.mxu0 0
        %1543 = vmatprep.subr.bf16.mxu0 0
        %1544 = vmatpush1.bf16.msra.mxu0 0
        %1545 = vmatprep.subr.bf16.mxu0 0
        %1546 = vmatpush1.bf16.msra.mxu0 0
        %1547 = vmatprep.subr.bf16.mxu0 0
        %1548 = vmatpush1.bf16.msra.mxu0 0
        %1549 = vmatprep.mubr.bf16.mxu0 0
        %1550 = vmatmul.mubr.bf16.gmra.mrb[0].mxu0 %v1512
        %v1551 = vpop.f32.mrb[0].mxu0
        %v1552 = vadd.f32 0.0, %v1551
        %v1553 = vpop.f32.mrb[0].mxu0
        %v1554 = vpop.f32.mrb[0].mxu0
        %v1555 = vpop.f32.mrb[0].mxu0
        %1556 = vdwg.mxu0
        %1558 = vrot.lane.b32.xlu0 %v1552, 16
        %v1559 = vpop.permute.xlu0 %1558
        %v1561 = vsel %vm743, %v1440, %v1559
        %s1562 = scalar_lea.vmem %s6, 16
        %v1563 = vld [vmem:[%s1562] sm:$0xf]
        %v1564 = vld [vmem:[%s1562 + $0x4] sm:$0xf]
        %v1565 = vld [vmem:[%s1562 + $0x8] sm:$0xf]
        %v1566 = vld [vmem:[%s1562 + $0xc] sm:$0xf]
        %s1567 = scalar_lea.vmem %s7, 1
        %v1568 = vld [vmem:[%s1567] sm:$0x1]
        %v1569 = vpack.c.bf16 %v1561, %v1561
        %v1571 = vlaneseq
        %v1572 = vshrl.u32 %v1571, 7
        %v1573 = vsub.s32 0, %v1572
        %v1574 = vrot.slane %v1568, %v1573
        %v1580 = vunpack.c.l.b16 %v1563
        %v1581 = vunpack.c.l.b16 %v1564
        %v1582 = vunpack.c.l.b16 %v1565
        %v1583 = vunpack.c.l.b16 %v1566
        %v1584 = vpack.c.b16 %v1581, %v1580
        %v1585 = vpack.c.b16 %v1583, %v1582
        %v1589 = vsel %vm642, %v1569, 0
        %1591 = vmatprep.subr.bf16.mxu0 0
        %1592 = vmatpush1.bf16.msra.mxu0 %v1584
        %1593 = vmatprep.subr.bf16.mxu0 0
        %1594 = vmatpush1.bf16.msra.mxu0 %v1585
        %1595 = vmatprep.subr.bf16.mxu0 0
        %1596 = vmatpush1.bf16.msra.mxu0 0
        %1597 = vmatprep.subr.bf16.mxu0 0
        %1598 = vmatpush1.bf16.msra.mxu0 0
        %1599 = vmatprep.subr.bf16.mxu0 0
        %1600 = vmatpush1.bf16.msra.mxu0 0
        %1601 = vmatprep.subr.bf16.mxu0 0
        %1602 = vmatpush1.bf16.msra.mxu0 0
        %1603 = vmatprep.subr.bf16.mxu0 0
        %1604 = vmatpush1.bf16.msra.mxu0 0
        %1605 = vmatprep.subr.bf16.mxu0 0
        %1606 = vmatpush1.bf16.msra.mxu0 0
        %1607 = vmatprep.subr.bf16.mxu0 0
        %1608 = vmatpush1.bf16.msra.mxu0 0
        %1609 = vmatprep.subr.bf16.mxu0 0
        %1610 = vmatpush1.bf16.msra.mxu0 0
        %1611 = vmatprep.subr.bf16.mxu0 0
        %1612 = vmatpush1.bf16.msra.mxu0 0
        %1613 = vmatprep.subr.bf16.mxu0 0
        %1614 = vmatpush1.bf16.msra.mxu0 0
        %1615 = vmatprep.subr.bf16.mxu0 0
        %1616 = vmatpush1.bf16.msra.mxu0 0
        %1617 = vmatprep.subr.bf16.mxu0 0
        %1618 = vmatpush1.bf16.msra.mxu0 0
        %1619 = vmatprep.subr.bf16.mxu0 0
        %1620 = vmatpush1.bf16.msra.mxu0 0
        %1621 = vmatprep.subr.bf16.mxu0 0
        %1622 = vmatpush1.bf16.msra.mxu0 0
        %1623 = vmatprep.mubr.bf16.mxu0 0
        %1624 = vmatmul.mubr.bf16.gmra.mrb[0].mxu0 %v1589
        %v1625 = vpop.f32.mrb[0].mxu0
        %v1626 = vadd.f32 %v1574, %v1625
        %v1627 = vpop.f32.mrb[0].mxu0
        %v1628 = vpop.f32.mrb[0].mxu0
        %v1629 = vpop.f32.mrb[0].mxu0
        %1630 = vdwg.mxu0
        %v1631 = vadd.f32 %v1263, %v1626
        %s1632 = scalar_lea.vmem %s8, 1
        %v1633 = vld [vmem:[%s1632] sm:$0x1]
        %s1634 = scalar_lea.vmem %s9, 1
        %v1635 = vld [vmem:[%s1634] sm:$0x1]
        %v1636 = vsel %vm642, %v1631, 0.0
        %1637 = vadd.xlane.f32.xlu0 %v1636
        %v1638 = vpop.xlane.xlu0 %1637
        %v1639 = vmul.f32 %v1638, %v646
        %v1640 = vsub.f32 %v1631, %v1639
        %v1641 = vmul.f32 %v1640, %v1640
        %v1642 = vsel %vm642, %v1641, 0.0
        %1643 = vadd.xlane.f32.xlu0 %v1642
        %v1644 = vpop.xlane.xlu0 %1643
        %v1645 = vmul.f32 %v1644, %v646
        %v1646 = vadd.f32 %v1645, 1e-12
        %v1647 = vrsqrt.pop %v1646
        %v1648 = vmul.f32 %v1640, %v1647
        %v1650 = vlaneseq
        %v1651 = vshrl.u32 %v1650, 7
        %v1652 = vsub.s32 0, %v1651
        %v1653 = vrot.slane %v1633, %v1652
        %v1655 = vmul.f32 %v1648, %v1653
        %v1657 = vlaneseq
        %v1658 = vshrl.u32 %v1657, 7
        %v1659 = vsub.s32 0, %v1658
        %v1660 = vrot.slane %v1635, %v1659
        %v1662 = vadd.f32 %v1655, %v1660
        %s1663 = scalar_lea.vmem %s10, 16
        %v1664 = vld [vmem:[%s1663] sm:$0xf]
        %v1665 = vld [vmem:[%s1663 + $0x4] sm:$0xf]
        %v1666 = vld [vmem:[%s1663 + $0x8] sm:$0xf]
        %v1667 = vld [vmem:[%s1663 + $0xc] sm:$0xf]
        %s1668 = scalar_lea.vmem %s11, 1
        %v1669 = vld [vmem:[%s1668] sm:$0x1]
        %v1670 = vpack.c.bf16 %v1662, %v1662
        %v1672 = vlaneseq
        %v1673 = vshrl.u32 %v1672, 7
        %v1674 = vsub.s32 0, %v1673
        %v1675 = vrot.slane %v1669, %v1674
        %v1681 = vunpack.c.l.b16 %v1664
        %v1682 = vunpack.c.l.b16 %v1665
        %v1683 = vunpack.c.l.b16 %v1666
        %v1684 = vunpack.c.l.b16 %v1667
        %v1685 = vpack.c.b16 %v1682, %v1681
        %v1686 = vpack.c.b16 %v1684, %v1683
        %v1690 = vsel %vm642, %v1670, 0
        %1692 = vmatprep.subr.bf16.mxu0 0
        %1693 = vmatpush1.bf16.msra.mxu0 %v1685
        %1694 = vmatprep.subr.bf16.mxu0 0
        %1695 = vmatpush1.bf16.msra.mxu0 %v1686
        %1696 = vmatprep.subr.bf16.mxu0 0
        %1697 = vmatpush1.bf16.msra.mxu0 0
        %1698 = vmatprep.subr.bf16.mxu0 0
        %1699 = vmatpush1.bf16.msra.mxu0 0
        %1700 = vmatprep.subr.bf16.mxu0 0
        %1701 = vmatpush1.bf16.msra.mxu0 0
        %1702 = vmatprep.subr.bf16.mxu0 0
        %1703 = vmatpush1.bf16.msra.mxu0 0
        %1704 = vmatprep.subr.bf16.mxu0 0
        %1705 = vmatpush1.bf16.msra.mxu0 0
        %1706 = vmatprep.subr.bf16.mxu0 0
        %1707 = vmatpush1.bf16.msra.mxu0 0
        %1708 = vmatprep.subr.bf16.mxu0 0
        %1709 = vmatpush1.bf16.msra.mxu0 0
        %1710 = vmatprep.subr.bf16.mxu0 0
        %1711 = vmatpush1.bf16.msra.mxu0 0
        %1712 = vmatprep.subr.bf16.mxu0 0
        %1713 = vmatpush1.bf16.msra.mxu0 0
        %1714 = vmatprep.subr.bf16.mxu0 0
        %1715 = vmatpush1.bf16.msra.mxu0 0
        %1716 = vmatprep.subr.bf16.mxu0 0
        %1717 = vmatpush1.bf16.msra.mxu0 0
        %1718 = vmatprep.subr.bf16.mxu0 0
        %1719 = vmatpush1.bf16.msra.mxu0 0
        %1720 = vmatprep.subr.bf16.mxu0 0
        %1721 = vmatpush1.bf16.msra.mxu0 0
        %1722 = vmatprep.subr.bf16.mxu0 0
        %1723 = vmatpush1.bf16.msra.mxu0 0
        %1724 = vmatprep.mubr.bf16.mxu0 0
        %1725 = vmatmul.mubr.bf16.gmra.mrb[0].mxu0 %v1690
        %v1726 = vpop.f32.mrb[0].mxu0
        %v1727 = vadd.f32 %v1675, %v1726
        %v1728 = vpop.f32.mrb[0].mxu0
        %v1729 = vpop.f32.mrb[0].mxu0
        %v1730 = vpop.f32.mrb[0].mxu0
        %1731 = vdwg.mxu0
        %v1732 = vmul.f32 %v1727, %v1727
        %v1733 = vmul.f32 %v1727, %v1732
        %v1734 = vmul.f32 %v1733, 0.044715
        %v1735 = vadd.f32 %v1727, %v1734
        %v1736 = vmul.f32 %v1735, 0.7978846
        %v1737 = vtanh.pop %v1736
        %v1738 = vadd.f32 %v1737, 1.0
        %v1739 = vmul.f32 %v1738, 0.5
        %v1740 = vmul.f32 %v1727, %v1739
        %s1741 = scalar_lea.vmem %s12, 32
        %v1742 = vld [vmem:[%s1741] sm:$0xf]
        %v1743 = vld [vmem:[%s1741 + $0x4] sm:$0xf]
        %v1744 = vld [vmem:[%s1741 + $0x8] sm:$0xf]
        %v1745 = vld [vmem:[%s1741 + $0xc] sm:$0xf]
        %v1746 = vld [vmem:[%s1741 + $0x10] sm:$0xf]
        %v1747 = vld [vmem:[%s1741 + $0x14] sm:$0xf]
        %v1748 = vld [vmem:[%s1741 + $0x18] sm:$0xf]
        %v1749 = vld [vmem:[%s1741 + $0x1c] sm:$0xf]
        %s1750 = scalar_lea.vmem %s13, 1
        %v1751 = vld [vmem:[%s1750] sm:$0x1]
        %v1752 = vpack.c.bf16 %v1740, %v1740
        %v1754 = vlaneseq
        %v1755 = vshrl.u32 %v1754, 7
        %v1756 = vsub.s32 0, %v1755
        %v1757 = vrot.slane %v1751, %v1756
        %v1767 = vunpack.c.l.b16 %v1742
        %v1768 = vunpack.c.l.b16 %v1743
        %v1769 = vunpack.c.l.b16 %v1744
        %v1770 = vunpack.c.l.b16 %v1745
        %v1771 = vunpack.c.l.b16 %v1746
        %v1772 = vunpack.c.l.b16 %v1747
        %v1773 = vunpack.c.l.b16 %v1748
        %v1774 = vunpack.c.l.b16 %v1749
        %v1775 = vpack.c.b16 %v1768, %v1767
        %v1776 = vpack.c.b16 %v1770, %v1769
        %v1777 = vpack.c.b16 %v1772, %v1771
        %v1778 = vpack.c.b16 %v1774, %v1773
        %v1784 = vsel %vm1190, %v1752, 0
        %1786 = vmatprep.subr.bf16.mxu0 0
        %1787 = vmatpush1.bf16.msra.mxu0 %v1775
        %1788 = vmatprep.subr.bf16.mxu0 0
        %1789 = vmatpush1.bf16.msra.mxu0 %v1776
        %1790 = vmatprep.subr.bf16.mxu0 0
        %1791 = vmatpush1.bf16.msra.mxu0 %v1777
        %1792 = vmatprep.subr.bf16.mxu0 0
        %1793 = vmatpush1.bf16.msra.mxu0 %v1778
        %1794 = vmatprep.subr.bf16.mxu0 0
        %1795 = vmatpush1.bf16.msra.mxu0 0
        %1796 = vmatprep.subr.bf16.mxu0 0
        %1797 = vmatpush1.bf16.msra.mxu0 0
        %1798 = vmatprep.subr.bf16.mxu0 0
        %1799 = vmatpush1.bf16.msra.mxu0 0
        %1800 = vmatprep.subr.bf16.mxu0 0
        %1801 = vmatpush1.bf16.msra.mxu0 0
        %1802 = vmatprep.subr.bf16.mxu0 0
        %1803 = vmatpush1.bf16.msra.mxu0 0
        %1804 = vmatprep.subr.bf16.mxu0 0
        %1805 = vmatpush1.bf16.msra.mxu0 0
        %1806 = vmatprep.subr.bf16.mxu0 0
        %1807 = vmatpush1.bf16.msra.mxu0 0
        %1808 = vmatprep.subr.bf16.mxu0 0
        %1809 = vmatpush1.bf16.msra.mxu0 0
        %1810 = vmatprep.subr.bf16.mxu0 0
        %1811 = vmatpush1.bf16.msra.mxu0 0
        %1812 = vmatprep.subr.bf16.mxu0 0
        %1813 = vmatpush1.bf16.msra.mxu0 0
        %1814 = vmatprep.subr.bf16.mxu0 0
        %1815 = vmatpush1.bf16.msra.mxu0 0
        %1816 = vmatprep.subr.bf16.mxu0 0
        %1817 = vmatpush1.bf16.msra.mxu0 0
        %1818 = vmatprep.mubr.bf16.mxu0 0
        %1819 = vmatmul.mubr.bf16.gmra.mrb[0].mxu0 %v1784
        %v1820 = vpop.f32.mrb[0].mxu0
        %v1821 = vadd.f32 %v1757, %v1820
        %v1822 = vpop.f32.mrb[0].mxu0
        %v1823 = vpop.f32.mrb[0].mxu0
        %v1824 = vpop.f32.mrb[0].mxu0
        %1825 = vdwg.mxu0
        %v1826 = vadd.f32 %v1662, %v1821
        %s1827 = scalar_lea.vmem %s14, 1
        %v1828 = vld [vmem:[%s1827] sm:$0x1]
        %s1829 = scalar_lea.vmem %s15, 1
        %v1830 = vld [vmem:[%s1829] sm:$0x1]
        %v1831 = vsel %vm642, %v1826, 0.0
        %1832 = vadd.xlane.f32.xlu0 %v1831
        %v1833 = vpop.xlane.xlu0 %1832
        %v1834 = vmul.f32 %v1833, %v646
        %v1835 = vsub.f32 %v1826, %v1834
        %v1836 = vmul.f32 %v1835, %v1835
        %v1837 = vsel %vm642, %v1836, 0.0
        %1838 = vadd.xlane.f32.xlu0 %v1837
        %v1839 = vpop.xlane.xlu0 %1838
        %v1840 = vmul.f32 %v1839, %v646
        %v1841 = vadd.f32 %v1840, 1e-12
        %v1842 = vrsqrt.pop %v1841
        %v1843 = vmul.f32 %v1835, %v1842
        %v1845 = vlaneseq
        %v1846 = vshrl.u32 %v1845, 7
        %v1847 = vsub.s32 0, %v1846
        %v1848 = vrot.slane %v1828, %v1847
        %v1850 = vmul.f32 %v1843, %v1848
        %v1852 = vlaneseq
        %v1853 = vshrl.u32 %v1852, 7
        %v1854 = vsub.s32 0, %v1853
        %v1855 = vrot.slane %v1830, %v1854
        %v1857 = vadd.f32 %v1850, %v1855
        %v1858 = vld [vmem:[%s16] sm:$0xf]
        %v1859 = vld [vmem:[%s16 + $0x4] sm:$0xf]
        %v1860 = vld [vmem:[%s16 + $0x8] sm:$0xf]
        %v1861 = vld [vmem:[%s16 + $0xc] sm:$0xf]
        %v1862 = vld [vmem:[%s17] sm:$0x1]
        %v1863 = vpack.c.bf16 %v1857, %v1857
        %v1868 = vunpack.c.l.b16 %v1858
        %v1869 = vunpack.c.l.b16 %v1859
        %v1870 = vunpack.c.l.b16 %v1860
        %v1871 = vunpack.c.l.b16 %v1861
        %v1872 = vpack.c.b16 %v1869, %v1868
        %v1873 = vpack.c.b16 %v1871, %v1870
        %v1877 = vsel %vm642, %v1863, 0
        %1879 = vmatprep.subr.bf16.mxu0 0
        %1880 = vmatpush1.bf16.msra.mxu0 %v1872
        %1881 = vmatprep.subr.bf16.mxu0 0
        %1882 = vmatpush1.bf16.msra.mxu0 %v1873
        %1883 = vmatprep.subr.bf16.mxu0 0
        %1884 = vmatpush1.bf16.msra.mxu0 0
        %1885 = vmatprep.subr.bf16.mxu0 0
        %1886 = vmatpush1.bf16.msra.mxu0 0
        %1887 = vmatprep.subr.bf16.mxu0 0
        %1888 = vmatpush1.bf16.msra.mxu0 0
        %1889 = vmatprep.subr.bf16.mxu0 0
        %1890 = vmatpush1.bf16.msra.mxu0 0
        %1891 = vmatprep.subr.bf16.mxu0 0
        %1892 = vmatpush1.bf16.msra.mxu0 0
        %1893 = vmatprep.subr.bf16.mxu0 0
        %1894 = vmatpush1.bf16.msra.mxu0 0
        %1895 = vmatprep.subr.bf16.mxu0 0
        %1896 = vmatpush1.bf16.msra.mxu0 0
        %1897 = vmatprep.subr.bf16.mxu0 0
        %1898 = vmatpush1.bf16.msra.mxu0 0
        %1899 = vmatprep.subr.bf16.mxu0 0
        %1900 = vmatpush1.bf16.msra.mxu0 0
        %1901 = vmatprep.subr.bf16.mxu0 0
        %1902 = vmatpush1.bf16.msra.mxu0 0
        %1903 = vmatprep.subr.bf16.mxu0 0
        %1904 = vmatpush1.bf16.msra.mxu0 0
        %1905 = vmatprep.subr.bf16.mxu0 0
        %1906 = vmatpush1.bf16.msra.mxu0 0
        %1907 = vmatprep.subr.bf16.mxu0 0
        %1908 = vmatpush1.bf16.msra.mxu0 0
        %1909 = vmatprep.subr.bf16.mxu0 0
        %1910 = vmatpush1.bf16.msra.mxu0 0
        %1911 = vmatprep.mubr.bf16.mxu0 0
        %1912 = vmatmul.mubr.bf16.gmra.mrb[0].mxu0 %v1877
        %v1913 = vpop.f32.mrb[0].mxu0
        %v1914 = vadd.f32 %v1862, %v1913
        %v1915 = vpop.f32.mrb[0].mxu0
        %v1916 = vpop.f32.mrb[0].mxu0
        %v1917 = vpop.f32.mrb[0].mxu0
        %1918 = vdwg.mxu0
        %v1919 = vtanh.pop %v1914
        %v1920 = vld [vmem:[%s18] sm:$0xf]
        %v1921 = vld [vmem:[%s18 + $0x4] sm:$0xf]
        %v1922 = vld [vmem:[%s18 + $0x8] sm:$0xf]
        %v1923 = vld [vmem:[%s18 + $0xc] sm:$0xf]
        %v1924 = vld [vmem:[%s19] sm:$0x1]
        %v1925 = vpack.c.bf16 %v1919, %v1919
        %v1930 = vunpack.c.l.b16 %v1920
        %v1931 = vunpack.c.l.b16 %v1921
        %v1932 = vunpack.c.l.b16 %v1922
        %v1933 = vunpack.c.l.b16 %v1923
        %v1934 = vpack.c.b16 %v1931, %v1930
        %v1935 = vpack.c.b16 %v1933, %v1932
        %v1939 = vsel %vm642, %v1925, 0
        %1941 = vmatprep.subr.bf16.mxu0 0
        %1942 = vmatpush1.bf16.msra.mxu0 %v1934
        %1943 = vmatprep.subr.bf16.mxu0 0
        %1944 = vmatpush1.bf16.msra.mxu0 %v1935
        %1945 = vmatprep.subr.bf16.mxu0 0
        %1946 = vmatpush1.bf16.msra.mxu0 0
        %1947 = vmatprep.subr.bf16.mxu0 0
        %1948 = vmatpush1.bf16.msra.mxu0 0
        %1949 = vmatprep.subr.bf16.mxu0 0
        %1950 = vmatpush1.bf16.msra.mxu0 0
        %1951 = vmatprep.subr.bf16.mxu0 0
        %1952 = vmatpush1.bf16.msra.mxu0 0
        %1953 = vmatprep.subr.bf16.mxu0 0
        %1954 = vmatpush1.bf16.msra.mxu0 0
        %1955 = vmatprep.subr.bf16.mxu0 0
        %1956 = vmatpush1.bf16.msra.mxu0 0
        %1957 = vmatprep.subr.bf16.mxu0 0
        %1958 = vmatpush1.bf16.msra.mxu0 0
        %1959 = vmatprep.subr.bf16.mxu0 0
        %1960 = vmatpush1.bf16.msra.mxu0 0
        %1961 = vmatprep.subr.bf16.mxu0 0
        %1962 = vmatpush1.bf16.msra.mxu0 0
        %1963 = vmatprep.subr.bf16.mxu0 0
        %1964 = vmatpush1.bf16.msra.mxu0 0
        %1965 = vmatprep.subr.bf16.mxu0 0
        %1966 = vmatpush1.bf16.msra.mxu0 0
        %1967 = vmatprep.subr.bf16.mxu0 0
        %1968 = vmatpush1.bf16.msra.mxu0 0
        %1969 = vmatprep.subr.bf16.mxu0 0
        %1970 = vmatpush1.bf16.msra.mxu0 0
        %1971 = vmatprep.subr.bf16.mxu0 0
        %1972 = vmatpush1.bf16.msra.mxu0 0
        %1973 = vmatprep.mubr.bf16.mxu0 0
        %1974 = vmatmul.mubr.bf16.gmra.mrb[0].mxu0 %v1939
        %v1975 = vpop.f32.mrb[0].mxu0
        %v1976 = vadd.f32 %v1924, %v1975
        %v1977 = vpop.f32.mrb[0].mxu0
        %v1978 = vpop.f32.mrb[0].mxu0
        %v1979 = vpop.f32.mrb[0].mxu0
        %1980 = vdwg.mxu0
        %vm1981 = vcmask 8192
        %1982 = vst.msk [vmem:[%s630] sm:$0x1] %vm1981, %v1976
        %s1983 = sand.u32 %s472, 1
        %s1984 = scalar_lea.sflag [#allocation3], %s1983
        %s1985 = sand.u32 %s472, 1
        %s1986 = scalar_lea.vmem [#allocation2], %s1985
        // Predicated region
        $region101: #{rank_model_forward.1} parent=99 // pred_check
          %p1987 = pneg %p482
        $region102: #{rank_model_forward.1} parent=99 // pred_check_branch
          %1989 = sbr.rel (%p1987) target = $region104
        $region103: #{rank_model_forward.1} parent=99 // pred_region
          %s1991 = ssub.s32 16, 16
          %1992 = vsyncadd %s1984, %s1991
          %s1993 = smul.addr %s34, 16
          %s1994 = scalar_lea.hbm %s20, %s1993
          %s1996 = sshll.u32 %s1986, 4
          %s1997 = int_to_ptr.vmem [resolvable:$true] %s1996
          %1999 = dma.vmem_to_hbm [thread:$0]  %s1997, 16, %s1994, %s1984
        $region104: #{rank_model_forward.1} parent=99 // pred_fallthru
          _
      $region100: #{rank_model_forward.1} parent=5 // pred_fallthru
        _
      %p2000 = scmp.le.s32.totalorder 2, %s29
      // Predicated region
      $region105: #{rank_model_forward.1} parent=5 // pred_check
        %p2001 = pneg %p2000
      $region106: #{rank_model_forward.1} parent=5 // pred_check_branch
        %2003 = sbr.rel (%p2001) target = $region108
      $region107: #{rank_model_forward.1} parent=5 // pred_region
        %s2004 = ssub.s32 %s29, 2
        // Predicated region
        $region109: #{rank_model_forward.1} parent=107 // pred_check
          %p2005 = pneg %p488
        $region110: #{rank_model_forward.1} parent=107 // pred_check_branch
          %2007 = sbr.rel (%p2005) target = $region112
        $region111: #{rank_model_forward.1} parent=107 // pred_region
          %s2008 = sand.u32 %s473, 1
          %s2009 = scalar_lea.sflag [#allocation3], %s2008
          %s2010 = sand.u32 %s473, 1
          %s2011 = scalar_lea.vmem [#allocation2], %s2010
          %2012 = dma.done %s2009, 16
        $region112: #{rank_model_forward.1} parent=107 // pred_fallthru
          _
      $region108: #{rank_model_forward.1} parent=5 // pred_fallthru
        _
    $region6: #{rank_model_forward.1} parent=1 // loop_footer
      %s33 = sadd.s32 1, %s29
    $region7: #{rank_model_forward.1} parent=1 // loop_footer_branch
      %28 = sbr.rel target = $region3
    $region8: #{rank_model_forward.1} parent=1 // loop_exit
      _
    %2013 = vsyncpa [#allocation3], 1
    %s2014 = scalar_lea.sflag [#allocation3], 1
    %2015 = vsyncpa %s2014, 1

</llo_original>
